<compile_context>
chip_gen: v5e
topology: v5e:2x2
jax: 0.10.0
libtpu: 0.0.40
codegen_flags: <defaults>
</compile_context>

<pallas_src>
import jax
import jax.numpy as jnp
from jax.experimental import pallas as pl
from jax.experimental.pallas import tpu as pltpu


def _round_up(x, m):
    return (x + m - 1) // m * m


# ----------------------------- Pallas kernel --------------------------------


def _char_bilstm_kernel(x_ref, len_ref, wih_ref, whh_ref, b_ref, wp_ref, bp_ref,
                        o_ref, gx_ref):
    # x_ref:   [TN, W*D]   lane-dense char embeddings (timestep-major along lanes)
    # len_ref: [TN, 1]     valid char length per word (int32; 0 for padding rows)
    # wih_ref: [W*D, W*8H] fused input weights: column block t = gate-interleaved
    #                      [fwd cols applied to x_t | bwd cols applied to x_{W-1-t}]
    # whh_ref: [2H, 8H]    packed recurrent weights (rows 0:H feed fwd cols, H:2H bwd)
    # b_ref:   [1, W*8H]   packed biases (b_ih + b_hh), tiled over the W column blocks
    # wp_ref:  [2H, P]     char projection weight, zero-padded to P (=128) lanes
    # bp_ref:  [1, P]      char projection bias (f32), zero-padded
    # o_ref:   [TN, P]     lane-dense output slab (f32); wrapper keeps [:, :H]
    # gx_ref:  [TN, W*8H]  f32 VMEM scratch: staged gate pre-activations
    TN = x_ref.shape[0]
    H2 = whh_ref.shape[0]            # 2H
    H = H2 // 2
    G = 4 * H2                       # 8H gate-tile width (= 128 lanes when H = 16)
    W = b_ref.shape[1] // G

    whh = whh_ref[...]
    mm_dtype = whh.dtype

    # ---- one fused input projection for all timesteps and both directions ----
    # [TN, W*D] @ [W*D, W*8H]; column block t is already the combined fwd/bwd gate
    # pre-activation (gx_comb) for recurrence step t.  Staged in VMEM scratch.
    gx_ref[...] = (jnp.dot(x_ref[...], wih_ref[...],
                           preferred_element_type=jnp.float32) + b_ref[...])

    # ---- hoisted, state-independent mask ingredients ----
    lens_b = jnp.broadcast_to(len_ref[...], (TN, H2))           # [TN, 2H] int32
    lane2 = jax.lax.broadcasted_iota(jnp.int32, (TN, H2), 1)
    fwd_half = lane2 < H                                        # fwd half of [h_f|h_b]
    pos0 = jnp.where(fwd_half, 0, W - 1)                        # char pos consumed at t=0
    dsgn = jnp.where(fwd_half, 1, -1)                           # per-half step direction

    # ---- fused fwd+bwd recurrence, fully unrolled (W is small & static) ----
    hc = jnp.zeros((TN, H2), jnp.float32)                       # [h_f | h_b]
    cc = jnp.zeros((TN, H2), jnp.float32)                       # [c_f | c_b]
    for t in range(W):
        gates = gx_ref[:, t * G:(t + 1) * G] + jnp.dot(
            hc.astype(mm_dtype), whh, preferred_element_type=jnp.float32)
        # PyTorch gate order i, f, g, o; each slice is [fwd | bwd] of width 2H.
        i = jax.nn.sigmoid(gates[:, 0 * H2:1 * H2])
        f = jax.nn.sigmoid(gates[:, 1 * H2:2 * H2])
        g = jnp.tanh(gates[:, 2 * H2:3 * H2])
        o = jax.nn.sigmoid(gates[:, 3 * H2:4 * H2])
        c_new = f * cc + i * g
        h_new = o * jnp.tanh(c_new)
        # packed-sequence semantics: update a half only while its consumed char
        # position (fwd: t, bwd: W-1-t) is < len.
        mask = (pos0 + dsgn * t) < lens_b                       # [TN, 2H] bool
        hc = jnp.where(mask, h_new, hc)
        cc = jnp.where(mask, c_new, cc)

    # ---- char projection: tanh([h_f | h_b] @ Wp + bp), lane-dense padded output ----
    o_ref[...] = jnp.tanh(jnp.dot(hc.astype(mm_dtype), wp_ref[...],
                                  preferred_element_type=jnp.float32) + bp_ref[...])


# ----------------------------- param packing ---------------------------------


def _pack_params(params, W, mm_dtype):
    """Pack per-direction LSTM params into the fused layouts the kernel expects."""
    H = params["w_hh_f"].shape[0]
    D = params["w_ih_f"].shape[0]
    G = 8 * H

    def interleave_cols(a_f, a_r):
        # [rows, 4H] x 2 -> [rows, 8H]; gate g occupies cols [g*2H,(g+1)*2H) = [fwd|bwd]
        rows = a_f.shape[0]
        af = a_f.reshape(rows, 4, H)
        ar = a_r.reshape(rows, 4, H)
        return jnp.concatenate([af, ar], axis=-1).reshape(rows, G)

    # fused input-projection weight [W*D, W*G]: output column block t holds the fwd
    # weights applied to x_t and the bwd weights applied to x_{W-1-t}.
    wf = interleave_cols(params["w_ih_f"], jnp.zeros_like(params["w_ih_f"]))
    wr = interleave_cols(jnp.zeros_like(params["w_ih_r"]), params["w_ih_r"])
    w_ih = jnp.zeros((W * D, W * G), jnp.float32)
    for t in range(W):
        w_ih = w_ih.at[t * D:(t + 1) * D, t * G:(t + 1) * G].add(wf)
        w_ih = w_ih.at[(W - 1 - t) * D:(W - t) * D, t * G:(t + 1) * G].add(wr)
    w_ih = w_ih.astype(mm_dtype)

    zeros_h = jnp.zeros_like(params["w_hh_f"])
    top = interleave_cols(params["w_hh_f"], zeros_h)   # h_f rows feed fwd cols only
    bot = interleave_cols(zeros_h, params["w_hh_r"])   # h_b rows feed bwd cols only
    w_hh = jnp.concatenate([top, bot], axis=0).astype(mm_dtype)          # [2H, 8H]

    bias = interleave_cols(params["b_f"], params["b_r"]).astype(jnp.float32)  # [1, 8H]
    bias = jnp.tile(bias, (1, W))                                         # [1, W*8H]

    # projection zero-padded to a lane-dense (>=128-column) output slab
    P = max(128, _round_up(H, 128))
    w_proj = jnp.zeros((2 * H, P), jnp.float32).at[:, :H].set(params["w_proj"])
    b_proj = jnp.zeros((1, P), jnp.float32).at[:, :H].set(params["b_proj"])
    return w_ih, w_hh, bias, w_proj.astype(mm_dtype), b_proj, P


# ------------------------------- wrapper -------------------------------------


def _num_tensorcores():
    """Best-effort TensorCores-per-chip (2 on v7x megacore, 1 on v5e/v6e)."""
    try:
        info = pltpu.get_tpu_info()
        for attr in ("num_cores", "cores_per_chip", "tensorcores_per_chip",
                     "num_tensorcores"):
            v = getattr(info, attr, None)
            if v:
                return max(1, min(int(v), 2))
    except Exception:
        pass
    try:
        if "v7" in jax.devices()[0].device_kind.lower():
            return 2
    except Exception:
        pass
    return 1


def embedding_layer_forward(params, word_ids, char_ids, word_lens, *,
                            block_n=256, matmul_dtype=jnp.bfloat16):
    word_tab = params["word_embedding"]
    char_tab = params["char_embedding"]
    B, S = word_ids.shape
    W = char_ids.shape[2]
    N = B * S
    WD = word_tab.shape[1]
    D = char_tab.shape[1]
    H = params["w_hh_f"].shape[0]
    # layout assumptions (lane alignment of the packed gate tile & input slab)
    assert (8 * H) % 128 == 0, "8*char_hidden_dim must be a multiple of 128"
    assert (W * D) % 128 == 0, "max_word_len * char_dim must be a multiple of 128"

    # glue: embedding gathers (word embeddings never enter the kernel)
    word_emb = jnp.take(word_tab, word_ids.reshape(N), axis=0)            # [N, WD]
    char_emb = jnp.take(char_tab, char_ids.reshape(N, W), axis=0)         # [N, W, D]
    char_emb = char_emb.reshape(N, W * D).astype(matmul_dtype)            # lane-dense
    lens = word_lens.reshape(N, 1).astype(jnp.int32)

    # ---- padding-minimizing block selection ----
    num_tc = _num_tensorcores()
    num_blocks = max(1, -(-N // block_n))
    if num_tc > 1 and N >= 256:
        # keep both v7x TensorCores busy with an even split (no-op on v5e/v6e)
        num_blocks = _round_up(max(num_blocks, num_tc), num_tc)
    TN = _round_up(-(-N // num_blocks), 8)
    N_pad = TN * num_blocks
    if N_pad != N:
        char_emb = jnp.pad(char_emb, ((0, N_pad - N), (0, 0)))
        lens = jnp.pad(lens, ((0, N_pad - N), (0, 0)))   # len 0 -> state stays 0

    w_ih, w_hh, bias, w_proj, b_proj, P = _pack_params(params, W, matmul_dtype)
    G = 8 * H

    out = pl.pallas_call(
        _char_bilstm_kernel,
        out_shape=jax.ShapeDtypeStruct((N_pad, P), jnp.float32),
        grid_spec=pltpu.PrefetchScalarGridSpec(
            num_scalar_prefetch=0,
            grid=(num_blocks,),
            in_specs=[
                pl.BlockSpec((TN, W * D), lambda i: (i, 0)),      # char embeddings
                pl.BlockSpec((TN, 1), lambda i: (i, 0)),          # lengths
                pl.BlockSpec((W * D, W * G), lambda i: (0, 0)),   # fused W_ih
                pl.BlockSpec((2 * H, G), lambda i: (0, 0)),       # packed W_hh
                pl.BlockSpec((1, W * G), lambda i: (0, 0)),       # packed bias
                pl.BlockSpec((2 * H, P), lambda i: (0, 0)),       # padded proj weight
                pl.BlockSpec((1, P), lambda i: (0, 0)),           # padded proj bias
            ],
            out_specs=pl.BlockSpec((TN, P), lambda i: (i, 0)),
            scratch_shapes=[pltpu.VMEM((TN, W * G), jnp.float32)],
        ),
        compiler_params=pltpu.CompilerParams(dimension_semantics=("parallel",)),
    )(char_emb, lens, w_ih, w_hh, bias, w_proj, b_proj)

    proj = out[:N, :H]
    final = jnp.concatenate([word_emb, proj], axis=-1)                    # [N, WD+H]
    # dropout (p=0.5) is identity in eval mode
    return final.reshape(B, S, WD + H)


# --------------------------- params + reference ------------------------------


def init_params(key, vocab_size, word_dim, char_size, char_dim, char_hidden_dim,
                padding_idx=0):
    ks = jax.random.split(key, 12)
    H = char_hidden_dim

    def u(k, shape, scale):
        return jax.random.uniform(k, shape, jnp.float32, -scale, scale)

    word_tab = jax.random.normal(ks[0], (vocab_size, word_dim), jnp.float32)
    word_tab = word_tab.at[padding_idx].set(0.0)
    char_tab = jax.random.normal(ks[1], (char_size, char_dim), jnp.float32)
    char_tab = char_tab.at[padding_idx].set(0.0)

    s = 1.0 / float(H) ** 0.5
    sp = 1.0 / float(2 * H) ** 0.5
    return dict(
        word_embedding=word_tab,
        char_embedding=char_tab,
        # PyTorch LSTM weights are [4H, in]; stored transposed as [in, 4H], gates i,f,g,o
        w_ih_f=u(ks[2], (char_dim, 4 * H), s),
        w_hh_f=u(ks[3], (H, 4 * H), s),
        b_f=u(ks[4], (1, 4 * H), s) + u(ks[5], (1, 4 * H), s),    # bias_ih + bias_hh
        w_ih_r=u(ks[6], (char_dim, 4 * H), s),
        w_hh_r=u(ks[7], (H, 4 * H), s),
        b_r=u(ks[8], (1, 4 * H), s) + u(ks[9], (1, 4 * H), s),
        # nn.Linear(2H, H): stored as [2H, H]
        w_proj=u(ks[10], (2 * H, H), sp),
        b_proj=u(ks[11], (1, H), sp),
    )


def reference_forward(params, word_ids, char_ids, word_lens):
    """Pure-JAX fp32 reference mirroring the PyTorch module (eval mode)."""
    hi = jax.lax.Precision.HIGHEST
    word_tab = params["word_embedding"]
    char_tab = params["char_embedding"]
    B, S = word_ids.shape
    W = char_ids.shape[2]
    N = B * S
    H = params["w_hh_f"].shape[0]

    word_emb = jnp.take(word_tab, word_ids.reshape(N), axis=0)
    x = jnp.take(char_tab, char_ids.reshape(N, W), axis=0)        # [N, W, D]
    lens = word_lens.reshape(N, 1).astype(jnp.int32)

    def lstm_step(x_t, h, c, w_ih, w_hh, b, mask):
        gates = (jnp.dot(x_t, w_ih, precision=hi)
                 + jnp.dot(h, w_hh, precision=hi) + b)
        i = jax.nn.sigmoid(gates[:, 0 * H:1 * H])
        f = jax.nn.sigmoid(gates[:, 1 * H:2 * H])
        g = jnp.tanh(gates[:, 2 * H:3 * H])
        o = jax.nn.sigmoid(gates[:, 3 * H:4 * H])
        c_new = f * c + i * g
        h_new = o * jnp.tanh(c_new)
        return jnp.where(mask, h_new, h), jnp.where(mask, c_new, c)

    zero = jnp.zeros((N, H), jnp.float32)
    h_fw, c_fw = zero, zero
    for t in range(W):
        h_fw, c_fw = lstm_step(x[:, t, :], h_fw, c_fw,
                               params["w_ih_f"], params["w_hh_f"], params["b_f"],
                               t < lens)
    h_bw, c_bw = zero, zero
    for t in range(W - 1, -1, -1):
        h_bw, c_bw = lstm_step(x[:, t, :], h_bw, c_bw,
                               params["w_ih_r"], params["w_hh_r"], params["b_r"],
                               t < lens)

    hh = jnp.concatenate([h_fw, h_bw], axis=-1)
    proj = jnp.tanh(jnp.dot(hh, params["w_proj"], precision=hi) + params["b_proj"])
    out = jnp.concatenate([word_emb, proj], axis=-1)
    return out.reshape(B, S, -1)


# --------------------------------- main --------------------------------------


if __name__ == "__main__":
    vocab_size, word_dim = 100, 32
    char_size, char_dim, char_hidden_dim = 50, 16, 16
    B, S, W = 2, 8, 8

    key = jax.random.PRNGKey(0)
    kp, kw, kc, kl = jax.random.split(key, 4)

    params = init_params(kp, vocab_size, word_dim, char_size, char_dim,
                         char_hidden_dim)

    word_ids = jax.random.randint(kw, (B, S), 0, vocab_size, dtype=jnp.int32)
    word_lens = jax.random.randint(kl, (B, S), 1, W + 1, dtype=jnp.int32)
    char_ids = jax.random.randint(kc, (B, S, W), 1, char_size, dtype=jnp.int32)
    # zero-pad char positions beyond each word's length (padding_idx = 0)
    pos = jnp.arange(W)[None, None, :]
    char_ids = jnp.where(pos < word_lens[:, :, None], char_ids, 0)

    ref = reference_forward(params, word_ids, char_ids, word_lens)

    # default performance path: bf16 matmul operands, fp32 accumulate + fp32 state
    out_bf16 = embedding_layer_forward(params, word_ids, char_ids, word_lens)
    out_bf16 = jax.block_until_ready(out_bf16)
    assert out_bf16.shape == (B, S, word_dim + char_hidden_dim), out_bf16.shape
    assert bool(jnp.all(jnp.isfinite(out_bf16)))
    assert bool(jnp.allclose(out_bf16, ref, rtol=3e-2, atol=3e-2)), (
        float(jnp.max(jnp.abs(out_bf16 - ref))))

    # precision check path: fp32 matmuls, tight tolerance
    out_f32 = embedding_layer_forward(params, word_ids, char_ids, word_lens,
                                      matmul_dtype=jnp.float32)
    out_f32 = jax.block_until_ready(out_f32)
    assert bool(jnp.all(jnp.isfinite(out_f32)))
    assert bool(jnp.allclose(out_f32, ref, rtol=1e-3, atol=1e-3)), (
        float(jnp.max(jnp.abs(out_f32 - ref))))

    print("KERNEL_OK")
</pallas_src>

<mosaic_0001>
module attributes {stable_mosaic.version = 11 : i64} {
  func.func @_char_bilstm_kernel(%arg0: i32, %arg1: memref<16x128xbf16, #tpu.memory_space<vmem>>, %arg2: memref<16x1xi32, #tpu.memory_space<vmem>>, %arg3: memref<128x1024xbf16, #tpu.memory_space<vmem>>, %arg4: memref<32x128xbf16, #tpu.memory_space<vmem>>, %arg5: memref<1x1024xf32, #tpu.memory_space<vmem>>, %arg6: memref<32x128xbf16, #tpu.memory_space<vmem>>, %arg7: memref<1x128xf32, #tpu.memory_space<vmem>>, %arg8: memref<16x128xf32, #tpu.memory_space<vmem>>, %arg9: memref<16x1024xf32, #tpu.memory_space<vmem>>) attributes {dimension_semantics = [#tpu.dimension_semantics<parallel>], iteration_bounds = array<i64: 1>, scalar_prefetch = 0 : i64, scratch_operands = 1 : i64, tpu.core_type = #tpu.core_type<tc>, window_params = [{transform_indices = @transform_0, window_bounds = array<i64: 16, 128>}, {transform_indices = @transform_1, window_bounds = array<i64: 16, 1>}, {pipeline_mode = #tpu.pipeline_mode<synchronous>, transform_indices = @transform_2, window_bounds = array<i64: 128, 1024>}, {pipeline_mode = #tpu.pipeline_mode<synchronous>, transform_indices = @transform_3, window_bounds = array<i64: 32, 128>}, {pipeline_mode = #tpu.pipeline_mode<synchronous>, transform_indices = @transform_4, window_bounds = array<i64: 1, 1024>}, {pipeline_mode = #tpu.pipeline_mode<synchronous>, transform_indices = @transform_5, window_bounds = array<i64: 32, 128>}, {pipeline_mode = #tpu.pipeline_mode<synchronous>, transform_indices = @transform_6, window_bounds = array<i64: 1, 128>}, {transform_indices = @transform_7, window_bounds = array<i64: 16, 128>}]} {
    %c0 = arith.constant 0 : index
    %c0_0 = arith.constant 0 : index
    %0 = vector.load %arg4[%c0, %c0_0] : memref<32x128xbf16, #tpu.memory_space<vmem>>, vector<32x128xbf16>
    %c0_1 = arith.constant 0 : index
    %c0_2 = arith.constant 0 : index
    %1 = vector.load %arg1[%c0_1, %c0_2] : memref<16x128xbf16, #tpu.memory_space<vmem>>, vector<16x128xbf16>
    %c0_3 = arith.constant 0 : index
    %c0_4 = arith.constant 0 : index
    %2 = vector.load %arg3[%c0_3, %c0_4] : memref<128x1024xbf16, #tpu.memory_space<vmem>>, vector<128x1024xbf16>
    %cst = arith.constant dense<0.000000e+00> : vector<16x1024xf32>
    %3 = tpu.matmul %1, %2, %cst {dimension_numbers = #tpu.dot_dimension_numbers<[1], [0], [0], [1], [0, 0, 1, 1], [], []>} : vector<16x128xbf16>, vector<128x1024xbf16>, vector<16x1024xf32> -> vector<16x1024xf32>
    %c0_5 = arith.constant 0 : index
    %c0_6 = arith.constant 0 : index
    %4 = vector.load %arg5[%c0_5, %c0_6] : memref<1x1024xf32, #tpu.memory_space<vmem>>, vector<1x1024xf32>
    %5 = vector.broadcast %4 : vector<1x1024xf32> to vector<16x1024xf32>
    %6 = arith.addf %3, %5 : vector<16x1024xf32>
    %c0_7 = arith.constant 0 : index
    %c0_8 = arith.constant 0 : index
    %7 = vector.load %arg9[%c0_7, %c0_8] : memref<16x1024xf32, #tpu.memory_space<vmem>>, vector<16x1024xf32>
    tpu.vector_store %arg9[%c0_7, %c0_8], %6 {strides = array<i32>} : memref<16x1024xf32, #tpu.memory_space<vmem>>, vector<16x1024xf32>,
    %c0_9 = arith.constant 0 : index
    %c0_10 = arith.constant 0 : index
    %8 = vector.load %arg2[%c0_9, %c0_10] : memref<16x1xi32, #tpu.memory_space<vmem>>, vector<16x1xi32>
    %9 = vector.shape_cast %8 : vector<16x1xi32> to vector<16x1xi32>
    %10 = vector.broadcast %9 : vector<16x1xi32> to vector<16x32xi32>
    %11 = tpu.iota {dimensions = array<i32: 1>} : vector<16x32xi32>
    %c16_i32 = arith.constant 16 : i32
    %12 = vector.broadcast %c16_i32 : i32 to vector<16x32xi32>
    %13 = arith.cmpi slt, %11, %12 : vector<16x32xi32>
    %c0_i32 = arith.constant 0 : i32
    %c7_i32 = arith.constant 7 : i32
    %14 = vector.broadcast %c0_i32 : i32 to vector<16x32xi32>
    %15 = vector.broadcast %c7_i32 : i32 to vector<16x32xi32>
    %16 = arith.select %13, %14, %15 : vector<16x32xi1>, vector<16x32xi32>
    %c1_i32 = arith.constant 1 : i32
    %c-1_i32 = arith.constant -1 : i32
    %17 = vector.broadcast %c1_i32 : i32 to vector<16x32xi32>
    %18 = vector.broadcast %c-1_i32 : i32 to vector<16x32xi32>
    %19 = arith.select %13, %17, %18 : vector<16x32xi1>, vector<16x32xi32>
    %cst_11 = arith.constant 0.000000e+00 : f32
    %20 = vector.broadcast %cst_11 : f32 to vector<16x32xf32>
    %cst_12 = arith.constant 0.000000e+00 : f32
    %21 = vector.broadcast %cst_12 : f32 to vector<16x32xf32>
    %c0_13 = arith.constant 0 : index
    %c0_14 = arith.constant 0 : index
    %22 = vector.load %arg9[%c0_13, %c0_14] : memref<16x1024xf32, #tpu.memory_space<vmem>>, vector<16x128xf32>
    %23 = arith.truncf %20 : vector<16x32xf32> to vector<16x32xbf16>
    %cst_15 = arith.constant dense<0.000000e+00> : vector<16x128xf32>
    %24 = tpu.matmul %23, %0, %cst_15 {dimension_numbers = #tpu.dot_dimension_numbers<[1], [0], [0], [1], [0, 0, 1, 1], [], []>} : vector<16x32xbf16>, vector<32x128xbf16>, vector<16x128xf32> -> vector<16x128xf32>
    %25 = arith.addf %22, %24 : vector<16x128xf32>
    %26 = vector.extract_strided_slice %25 {offsets = [0, 0], sizes = [16, 32], strides = [1, 1]} : vector<16x128xf32> to vector<16x32xf32>
    %27 = arith.negf %26 : vector<16x32xf32>
    %28 = math.exp %27 : vector<16x32xf32>
    %cst_16 = arith.constant 1.000000e+00 : f32
    %29 = vector.broadcast %cst_16 : f32 to vector<16x32xf32>
    %30 = arith.addf %29, %28 : vector<16x32xf32>
    %31 = arith.divf %29, %30 : vector<16x32xf32>
    %32 = vector.extract_strided_slice %25 {offsets = [0, 32], sizes = [16, 32], strides = [1, 1]} : vector<16x128xf32> to vector<16x32xf32>
    %33 = arith.negf %32 : vector<16x32xf32>
    %34 = math.exp %33 : vector<16x32xf32>
    %cst_17 = arith.constant 1.000000e+00 : f32
    %35 = vector.broadcast %cst_17 : f32 to vector<16x32xf32>
    %36 = arith.addf %35, %34 : vector<16x32xf32>
    %37 = arith.divf %35, %36 : vector<16x32xf32>
    %38 = vector.extract_strided_slice %25 {offsets = [0, 64], sizes = [16, 32], strides = [1, 1]} : vector<16x128xf32> to vector<16x32xf32>
    %39 = math.tanh %38 : vector<16x32xf32>
    %40 = vector.extract_strided_slice %25 {offsets = [0, 96], sizes = [16, 32], strides = [1, 1]} : vector<16x128xf32> to vector<16x32xf32>
    %41 = arith.negf %40 : vector<16x32xf32>
    %42 = math.exp %41 : vector<16x32xf32>
    %cst_18 = arith.constant 1.000000e+00 : f32
    %43 = vector.broadcast %cst_18 : f32 to vector<16x32xf32>
    %44 = arith.addf %43, %42 : vector<16x32xf32>
    %45 = arith.divf %43, %44 : vector<16x32xf32>
    %46 = arith.mulf %37, %21 : vector<16x32xf32>
    %47 = arith.mulf %31, %39 : vector<16x32xf32>
    %48 = arith.addf %46, %47 : vector<16x32xf32>
    %49 = math.tanh %48 : vector<16x32xf32>
    %50 = arith.mulf %45, %49 : vector<16x32xf32>
    %c0_i32_19 = arith.constant 0 : i32
    %51 = vector.broadcast %c0_i32_19 : i32 to vector<16x32xi32>
    %52 = arith.muli %19, %51 : vector<16x32xi32>
    %53 = arith.addi %16, %52 : vector<16x32xi32>
    %54 = arith.cmpi slt, %53, %10 : vector<16x32xi32>
    %55 = arith.select %54, %50, %20 : vector<16x32xi1>, vector<16x32xf32>
    %56 = arith.select %54, %48, %21 : vector<16x32xi1>, vector<16x32xf32>
    %c0_20 = arith.constant 0 : index
    %c128 = arith.constant 128 : index
    %57 = vector.load %arg9[%c0_20, %c128] : memref<16x1024xf32, #tpu.memory_space<vmem>>, vector<16x128xf32>
    %58 = arith.truncf %55 : vector<16x32xf32> to vector<16x32xbf16>
    %cst_21 = arith.constant dense<0.000000e+00> : vector<16x128xf32>
    %59 = tpu.matmul %58, %0, %cst_21 {dimension_numbers = #tpu.dot_dimension_numbers<[1], [0], [0], [1], [0, 0, 1, 1], [], []>} : vector<16x32xbf16>, vector<32x128xbf16>, vector<16x128xf32> -> vector<16x128xf32>
    %60 = arith.addf %57, %59 : vector<16x128xf32>
    %61 = vector.extract_strided_slice %60 {offsets = [0, 0], sizes = [16, 32], strides = [1, 1]} : vector<16x128xf32> to vector<16x32xf32>
    %62 = arith.negf %61 : vector<16x32xf32>
    %63 = math.exp %62 : vector<16x32xf32>
    %cst_22 = arith.constant 1.000000e+00 : f32
    %64 = vector.broadcast %cst_22 : f32 to vector<16x32xf32>
    %65 = arith.addf %64, %63 : vector<16x32xf32>
    %66 = arith.divf %64, %65 : vector<16x32xf32>
    %67 = vector.extract_strided_slice %60 {offsets = [0, 32], sizes = [16, 32], strides = [1, 1]} : vector<16x128xf32> to vector<16x32xf32>
    %68 = arith.negf %67 : vector<16x32xf32>
    %69 = math.exp %68 : vector<16x32xf32>
    %cst_23 = arith.constant 1.000000e+00 : f32
    %70 = vector.broadcast %cst_23 : f32 to vector<16x32xf32>
    %71 = arith.addf %70, %69 : vector<16x32xf32>
    %72 = arith.divf %70, %71 : vector<16x32xf32>
    %73 = vector.extract_strided_slice %60 {offsets = [0, 64], sizes = [16, 32], strides = [1, 1]} : vector<16x128xf32> to vector<16x32xf32>
    %74 = math.tanh %73 : vector<16x32xf32>
    %75 = vector.extract_strided_slice %60 {offsets = [0, 96], sizes = [16, 32], strides = [1, 1]} : vector<16x128xf32> to vector<16x32xf32>
    %76 = arith.negf %75 : vector<16x32xf32>
    %77 = math.exp %76 : vector<16x32xf32>
    %cst_24 = arith.constant 1.000000e+00 : f32
    %78 = vector.broadcast %cst_24 : f32 to vector<16x32xf32>
    %79 = arith.addf %78, %77 : vector<16x32xf32>
    %80 = arith.divf %78, %79 : vector<16x32xf32>
    %81 = arith.mulf %72, %56 : vector<16x32xf32>
    %82 = arith.mulf %66, %74 : vector<16x32xf32>
    %83 = arith.addf %81, %82 : vector<16x32xf32>
    %84 = math.tanh %83 : vector<16x32xf32>
    %85 = arith.mulf %80, %84 : vector<16x32xf32>
    %c1_i32_25 = arith.constant 1 : i32
    %86 = vector.broadcast %c1_i32_25 : i32 to vector<16x32xi32>
    %87 = arith.muli %19, %86 : vector<16x32xi32>
    %88 = arith.addi %16, %87 : vector<16x32xi32>
    %89 = arith.cmpi slt, %88, %10 : vector<16x32xi32>
    %90 = arith.select %89, %85, %55 : vector<16x32xi1>, vector<16x32xf32>
    %91 = arith.select %89, %83, %56 : vector<16x32xi1>, vector<16x32xf32>
    %c0_26 = arith.constant 0 : index
    %c256 = arith.constant 256 : index
    %92 = vector.load %arg9[%c0_26, %c256] : memref<16x1024xf32, #tpu.memory_space<vmem>>, vector<16x128xf32>
    %93 = arith.truncf %90 : vector<16x32xf32> to vector<16x32xbf16>
    %cst_27 = arith.constant dense<0.000000e+00> : vector<16x128xf32>
    %94 = tpu.matmul %93, %0, %cst_27 {dimension_numbers = #tpu.dot_dimension_numbers<[1], [0], [0], [1], [0, 0, 1, 1], [], []>} : vector<16x32xbf16>, vector<32x128xbf16>, vector<16x128xf32> -> vector<16x128xf32>
    %95 = arith.addf %92, %94 : vector<16x128xf32>
    %96 = vector.extract_strided_slice %95 {offsets = [0, 0], sizes = [16, 32], strides = [1, 1]} : vector<16x128xf32> to vector<16x32xf32>
    %97 = arith.negf %96 : vector<16x32xf32>
    %98 = math.exp %97 : vector<16x32xf32>
    %cst_28 = arith.constant 1.000000e+00 : f32
    %99 = vector.broadcast %cst_28 : f32 to vector<16x32xf32>
    %100 = arith.addf %99, %98 : vector<16x32xf32>
    %101 = arith.divf %99, %100 : vector<16x32xf32>
    %102 = vector.extract_strided_slice %95 {offsets = [0, 32], sizes = [16, 32], strides = [1, 1]} : vector<16x128xf32> to vector<16x32xf32>
    %103 = arith.negf %102 : vector<16x32xf32>
    %104 = math.exp %103 : vector<16x32xf32>
    %cst_29 = arith.constant 1.000000e+00 : f32
    %105 = vector.broadcast %cst_29 : f32 to vector<16x32xf32>
    %106 = arith.addf %105, %104 : vector<16x32xf32>
    %107 = arith.divf %105, %106 : vector<16x32xf32>
    %108 = vector.extract_strided_slice %95 {offsets = [0, 64], sizes = [16, 32], strides = [1, 1]} : vector<16x128xf32> to vector<16x32xf32>
    %109 = math.tanh %108 : vector<16x32xf32>
    %110 = vector.extract_strided_slice %95 {offsets = [0, 96], sizes = [16, 32], strides = [1, 1]} : vector<16x128xf32> to vector<16x32xf32>
    %111 = arith.negf %110 : vector<16x32xf32>
    %112 = math.exp %111 : vector<16x32xf32>
    %cst_30 = arith.constant 1.000000e+00 : f32
    %113 = vector.broadcast %cst_30 : f32 to vector<16x32xf32>
    %114 = arith.addf %113, %112 : vector<16x32xf32>
    %115 = arith.divf %113, %114 : vector<16x32xf32>
    %116 = arith.mulf %107, %91 : vector<16x32xf32>
    %117 = arith.mulf %101, %109 : vector<16x32xf32>
    %118 = arith.addf %116, %117 : vector<16x32xf32>
    %119 = math.tanh %118 : vector<16x32xf32>
    %120 = arith.mulf %115, %119 : vector<16x32xf32>
    %c2_i32 = arith.constant 2 : i32
    %121 = vector.broadcast %c2_i32 : i32 to vector<16x32xi32>
    %122 = arith.muli %19, %121 : vector<16x32xi32>
    %123 = arith.addi %16, %122 : vector<16x32xi32>
    %124 = arith.cmpi slt, %123, %10 : vector<16x32xi32>
    %125 = arith.select %124, %120, %90 : vector<16x32xi1>, vector<16x32xf32>
    %126 = arith.select %124, %118, %91 : vector<16x32xi1>, vector<16x32xf32>
    %c0_31 = arith.constant 0 : index
    %c384 = arith.constant 384 : index
    %127 = vector.load %arg9[%c0_31, %c384] : memref<16x1024xf32, #tpu.memory_space<vmem>>, vector<16x128xf32>
    %128 = arith.truncf %125 : vector<16x32xf32> to vector<16x32xbf16>
    %cst_32 = arith.constant dense<0.000000e+00> : vector<16x128xf32>
    %129 = tpu.matmul %128, %0, %cst_32 {dimension_numbers = #tpu.dot_dimension_numbers<[1], [0], [0], [1], [0, 0, 1, 1], [], []>} : vector<16x32xbf16>, vector<32x128xbf16>, vector<16x128xf32> -> vector<16x128xf32>
    %130 = arith.addf %127, %129 : vector<16x128xf32>
    %131 = vector.extract_strided_slice %130 {offsets = [0, 0], sizes = [16, 32], strides = [1, 1]} : vector<16x128xf32> to vector<16x32xf32>
    %132 = arith.negf %131 : vector<16x32xf32>
    %133 = math.exp %132 : vector<16x32xf32>
    %cst_33 = arith.constant 1.000000e+00 : f32
    %134 = vector.broadcast %cst_33 : f32 to vector<16x32xf32>
    %135 = arith.addf %134, %133 : vector<16x32xf32>
    %136 = arith.divf %134, %135 : vector<16x32xf32>
    %137 = vector.extract_strided_slice %130 {offsets = [0, 32], sizes = [16, 32], strides = [1, 1]} : vector<16x128xf32> to vector<16x32xf32>
    %138 = arith.negf %137 : vector<16x32xf32>
    %139 = math.exp %138 : vector<16x32xf32>
    %cst_34 = arith.constant 1.000000e+00 : f32
    %140 = vector.broadcast %cst_34 : f32 to vector<16x32xf32>
    %141 = arith.addf %140, %139 : vector<16x32xf32>
    %142 = arith.divf %140, %141 : vector<16x32xf32>
    %143 = vector.extract_strided_slice %130 {offsets = [0, 64], sizes = [16, 32], strides = [1, 1]} : vector<16x128xf32> to vector<16x32xf32>
    %144 = math.tanh %143 : vector<16x32xf32>
    %145 = vector.extract_strided_slice %130 {offsets = [0, 96], sizes = [16, 32], strides = [1, 1]} : vector<16x128xf32> to vector<16x32xf32>
    %146 = arith.negf %145 : vector<16x32xf32>
    %147 = math.exp %146 : vector<16x32xf32>
    %cst_35 = arith.constant 1.000000e+00 : f32
    %148 = vector.broadcast %cst_35 : f32 to vector<16x32xf32>
    %149 = arith.addf %148, %147 : vector<16x32xf32>
    %150 = arith.divf %148, %149 : vector<16x32xf32>
    %151 = arith.mulf %142, %126 : vector<16x32xf32>
    %152 = arith.mulf %136, %144 : vector<16x32xf32>
    %153 = arith.addf %151, %152 : vector<16x32xf32>
    %154 = math.tanh %153 : vector<16x32xf32>
    %155 = arith.mulf %150, %154 : vector<16x32xf32>
    %c3_i32 = arith.constant 3 : i32
    %156 = vector.broadcast %c3_i32 : i32 to vector<16x32xi32>
    %157 = arith.muli %19, %156 : vector<16x32xi32>
    %158 = arith.addi %16, %157 : vector<16x32xi32>
    %159 = arith.cmpi slt, %158, %10 : vector<16x32xi32>
    %160 = arith.select %159, %155, %125 : vector<16x32xi1>, vector<16x32xf32>
    %161 = arith.select %159, %153, %126 : vector<16x32xi1>, vector<16x32xf32>
    %c0_36 = arith.constant 0 : index
    %c512 = arith.constant 512 : index
    %162 = vector.load %arg9[%c0_36, %c512] : memref<16x1024xf32, #tpu.memory_space<vmem>>, vector<16x128xf32>
    %163 = arith.truncf %160 : vector<16x32xf32> to vector<16x32xbf16>
    %cst_37 = arith.constant dense<0.000000e+00> : vector<16x128xf32>
    %164 = tpu.matmul %163, %0, %cst_37 {dimension_numbers = #tpu.dot_dimension_numbers<[1], [0], [0], [1], [0, 0, 1, 1], [], []>} : vector<16x32xbf16>, vector<32x128xbf16>, vector<16x128xf32> -> vector<16x128xf32>
    %165 = arith.addf %162, %164 : vector<16x128xf32>
    %166 = vector.extract_strided_slice %165 {offsets = [0, 0], sizes = [16, 32], strides = [1, 1]} : vector<16x128xf32> to vector<16x32xf32>
    %167 = arith.negf %166 : vector<16x32xf32>
    %168 = math.exp %167 : vector<16x32xf32>
    %cst_38 = arith.constant 1.000000e+00 : f32
    %169 = vector.broadcast %cst_38 : f32 to vector<16x32xf32>
    %170 = arith.addf %169, %168 : vector<16x32xf32>
    %171 = arith.divf %169, %170 : vector<16x32xf32>
    %172 = vector.extract_strided_slice %165 {offsets = [0, 32], sizes = [16, 32], strides = [1, 1]} : vector<16x128xf32> to vector<16x32xf32>
    %173 = arith.negf %172 : vector<16x32xf32>
    %174 = math.exp %173 : vector<16x32xf32>
    %cst_39 = arith.constant 1.000000e+00 : f32
    %175 = vector.broadcast %cst_39 : f32 to vector<16x32xf32>
    %176 = arith.addf %175, %174 : vector<16x32xf32>
    %177 = arith.divf %175, %176 : vector<16x32xf32>
    %178 = vector.extract_strided_slice %165 {offsets = [0, 64], sizes = [16, 32], strides = [1, 1]} : vector<16x128xf32> to vector<16x32xf32>
    %179 = math.tanh %178 : vector<16x32xf32>
    %180 = vector.extract_strided_slice %165 {offsets = [0, 96], sizes = [16, 32], strides = [1, 1]} : vector<16x128xf32> to vector<16x32xf32>
    %181 = arith.negf %180 : vector<16x32xf32>
    %182 = math.exp %181 : vector<16x32xf32>
    %cst_40 = arith.constant 1.000000e+00 : f32
    %183 = vector.broadcast %cst_40 : f32 to vector<16x32xf32>
    %184 = arith.addf %183, %182 : vector<16x32xf32>
    %185 = arith.divf %183, %184 : vector<16x32xf32>
    %186 = arith.mulf %177, %161 : vector<16x32xf32>
    %187 = arith.mulf %171, %179 : vector<16x32xf32>
    %188 = arith.addf %186, %187 : vector<16x32xf32>
    %189 = math.tanh %188 : vector<16x32xf32>
    %190 = arith.mulf %185, %189 : vector<16x32xf32>
    %c4_i32 = arith.constant 4 : i32
    %191 = vector.broadcast %c4_i32 : i32 to vector<16x32xi32>
    %192 = arith.muli %19, %191 : vector<16x32xi32>
    %193 = arith.addi %16, %192 : vector<16x32xi32>
    %194 = arith.cmpi slt, %193, %10 : vector<16x32xi32>
    %195 = arith.select %194, %190, %160 : vector<16x32xi1>, vector<16x32xf32>
    %196 = arith.select %194, %188, %161 : vector<16x32xi1>, vector<16x32xf32>
    %c0_41 = arith.constant 0 : index
    %c640 = arith.constant 640 : index
    %197 = vector.load %arg9[%c0_41, %c640] : memref<16x1024xf32, #tpu.memory_space<vmem>>, vector<16x128xf32>
    %198 = arith.truncf %195 : vector<16x32xf32> to vector<16x32xbf16>
    %cst_42 = arith.constant dense<0.000000e+00> : vector<16x128xf32>
    %199 = tpu.matmul %198, %0, %cst_42 {dimension_numbers = #tpu.dot_dimension_numbers<[1], [0], [0], [1], [0, 0, 1, 1], [], []>} : vector<16x32xbf16>, vector<32x128xbf16>, vector<16x128xf32> -> vector<16x128xf32>
    %200 = arith.addf %197, %199 : vector<16x128xf32>
    %201 = vector.extract_strided_slice %200 {offsets = [0, 0], sizes = [16, 32], strides = [1, 1]} : vector<16x128xf32> to vector<16x32xf32>
    %202 = arith.negf %201 : vector<16x32xf32>
    %203 = math.exp %202 : vector<16x32xf32>
    %cst_43 = arith.constant 1.000000e+00 : f32
    %204 = vector.broadcast %cst_43 : f32 to vector<16x32xf32>
    %205 = arith.addf %204, %203 : vector<16x32xf32>
    %206 = arith.divf %204, %205 : vector<16x32xf32>
    %207 = vector.extract_strided_slice %200 {offsets = [0, 32], sizes = [16, 32], strides = [1, 1]} : vector<16x128xf32> to vector<16x32xf32>
    %208 = arith.negf %207 : vector<16x32xf32>
    %209 = math.exp %208 : vector<16x32xf32>
    %cst_44 = arith.constant 1.000000e+00 : f32
    %210 = vector.broadcast %cst_44 : f32 to vector<16x32xf32>
    %211 = arith.addf %210, %209 : vector<16x32xf32>
    %212 = arith.divf %210, %211 : vector<16x32xf32>
    %213 = vector.extract_strided_slice %200 {offsets = [0, 64], sizes = [16, 32], strides = [1, 1]} : vector<16x128xf32> to vector<16x32xf32>
    %214 = math.tanh %213 : vector<16x32xf32>
    %215 = vector.extract_strided_slice %200 {offsets = [0, 96], sizes = [16, 32], strides = [1, 1]} : vector<16x128xf32> to vector<16x32xf32>
    %216 = arith.negf %215 : vector<16x32xf32>
    %217 = math.exp %216 : vector<16x32xf32>
    %cst_45 = arith.constant 1.000000e+00 : f32
    %218 = vector.broadcast %cst_45 : f32 to vector<16x32xf32>
    %219 = arith.addf %218, %217 : vector<16x32xf32>
    %220 = arith.divf %218, %219 : vector<16x32xf32>
    %221 = arith.mulf %212, %196 : vector<16x32xf32>
    %222 = arith.mulf %206, %214 : vector<16x32xf32>
    %223 = arith.addf %221, %222 : vector<16x32xf32>
    %224 = math.tanh %223 : vector<16x32xf32>
    %225 = arith.mulf %220, %224 : vector<16x32xf32>
    %c5_i32 = arith.constant 5 : i32
    %226 = vector.broadcast %c5_i32 : i32 to vector<16x32xi32>
    %227 = arith.muli %19, %226 : vector<16x32xi32>
    %228 = arith.addi %16, %227 : vector<16x32xi32>
    %229 = arith.cmpi slt, %228, %10 : vector<16x32xi32>
    %230 = arith.select %229, %225, %195 : vector<16x32xi1>, vector<16x32xf32>
    %231 = arith.select %229, %223, %196 : vector<16x32xi1>, vector<16x32xf32>
    %c0_46 = arith.constant 0 : index
    %c768 = arith.constant 768 : index
    %232 = vector.load %arg9[%c0_46, %c768] : memref<16x1024xf32, #tpu.memory_space<vmem>>, vector<16x128xf32>
    %233 = arith.truncf %230 : vector<16x32xf32> to vector<16x32xbf16>
    %cst_47 = arith.constant dense<0.000000e+00> : vector<16x128xf32>
    %234 = tpu.matmul %233, %0, %cst_47 {dimension_numbers = #tpu.dot_dimension_numbers<[1], [0], [0], [1], [0, 0, 1, 1], [], []>} : vector<16x32xbf16>, vector<32x128xbf16>, vector<16x128xf32> -> vector<16x128xf32>
    %235 = arith.addf %232, %234 : vector<16x128xf32>
    %236 = vector.extract_strided_slice %235 {offsets = [0, 0], sizes = [16, 32], strides = [1, 1]} : vector<16x128xf32> to vector<16x32xf32>
    %237 = arith.negf %236 : vector<16x32xf32>
    %238 = math.exp %237 : vector<16x32xf32>
    %cst_48 = arith.constant 1.000000e+00 : f32
    %239 = vector.broadcast %cst_48 : f32 to vector<16x32xf32>
    %240 = arith.addf %239, %238 : vector<16x32xf32>
    %241 = arith.divf %239, %240 : vector<16x32xf32>
    %242 = vector.extract_strided_slice %235 {offsets = [0, 32], sizes = [16, 32], strides = [1, 1]} : vector<16x128xf32> to vector<16x32xf32>
    %243 = arith.negf %242 : vector<16x32xf32>
    %244 = math.exp %243 : vector<16x32xf32>
    %cst_49 = arith.constant 1.000000e+00 : f32
    %245 = vector.broadcast %cst_49 : f32 to vector<16x32xf32>
    %246 = arith.addf %245, %244 : vector<16x32xf32>
    %247 = arith.divf %245, %246 : vector<16x32xf32>
    %248 = vector.extract_strided_slice %235 {offsets = [0, 64], sizes = [16, 32], strides = [1, 1]} : vector<16x128xf32> to vector<16x32xf32>
    %249 = math.tanh %248 : vector<16x32xf32>
    %250 = vector.extract_strided_slice %235 {offsets = [0, 96], sizes = [16, 32], strides = [1, 1]} : vector<16x128xf32> to vector<16x32xf32>
    %251 = arith.negf %250 : vector<16x32xf32>
    %252 = math.exp %251 : vector<16x32xf32>
    %cst_50 = arith.constant 1.000000e+00 : f32
    %253 = vector.broadcast %cst_50 : f32 to vector<16x32xf32>
    %254 = arith.addf %253, %252 : vector<16x32xf32>
    %255 = arith.divf %253, %254 : vector<16x32xf32>
    %256 = arith.mulf %247, %231 : vector<16x32xf32>
    %257 = arith.mulf %241, %249 : vector<16x32xf32>
    %258 = arith.addf %256, %257 : vector<16x32xf32>
    %259 = math.tanh %258 : vector<16x32xf32>
    %260 = arith.mulf %255, %259 : vector<16x32xf32>
    %c6_i32 = arith.constant 6 : i32
    %261 = vector.broadcast %c6_i32 : i32 to vector<16x32xi32>
    %262 = arith.muli %19, %261 : vector<16x32xi32>
    %263 = arith.addi %16, %262 : vector<16x32xi32>
    %264 = arith.cmpi slt, %263, %10 : vector<16x32xi32>
    %265 = arith.select %264, %260, %230 : vector<16x32xi1>, vector<16x32xf32>
    %266 = arith.select %264, %258, %231 : vector<16x32xi1>, vector<16x32xf32>
    %c0_51 = arith.constant 0 : index
    %c896 = arith.constant 896 : index
    %267 = vector.load %arg9[%c0_51, %c896] : memref<16x1024xf32, #tpu.memory_space<vmem>>, vector<16x128xf32>
    %268 = arith.truncf %265 : vector<16x32xf32> to vector<16x32xbf16>
    %cst_52 = arith.constant dense<0.000000e+00> : vector<16x128xf32>
    %269 = tpu.matmul %268, %0, %cst_52 {dimension_numbers = #tpu.dot_dimension_numbers<[1], [0], [0], [1], [0, 0, 1, 1], [], []>} : vector<16x32xbf16>, vector<32x128xbf16>, vector<16x128xf32> -> vector<16x128xf32>
    %270 = arith.addf %267, %269 : vector<16x128xf32>
    %271 = vector.extract_strided_slice %270 {offsets = [0, 0], sizes = [16, 32], strides = [1, 1]} : vector<16x128xf32> to vector<16x32xf32>
    %272 = arith.negf %271 : vector<16x32xf32>
    %273 = math.exp %272 : vector<16x32xf32>
    %cst_53 = arith.constant 1.000000e+00 : f32
    %274 = vector.broadcast %cst_53 : f32 to vector<16x32xf32>
    %275 = arith.addf %274, %273 : vector<16x32xf32>
    %276 = arith.divf %274, %275 : vector<16x32xf32>
    %277 = vector.extract_strided_slice %270 {offsets = [0, 32], sizes = [16, 32], strides = [1, 1]} : vector<16x128xf32> to vector<16x32xf32>
    %278 = arith.negf %277 : vector<16x32xf32>
    %279 = math.exp %278 : vector<16x32xf32>
    %cst_54 = arith.constant 1.000000e+00 : f32
    %280 = vector.broadcast %cst_54 : f32 to vector<16x32xf32>
    %281 = arith.addf %280, %279 : vector<16x32xf32>
    %282 = arith.divf %280, %281 : vector<16x32xf32>
    %283 = vector.extract_strided_slice %270 {offsets = [0, 64], sizes = [16, 32], strides = [1, 1]} : vector<16x128xf32> to vector<16x32xf32>
    %284 = math.tanh %283 : vector<16x32xf32>
    %285 = vector.extract_strided_slice %270 {offsets = [0, 96], sizes = [16, 32], strides = [1, 1]} : vector<16x128xf32> to vector<16x32xf32>
    %286 = arith.negf %285 : vector<16x32xf32>
    %287 = math.exp %286 : vector<16x32xf32>
    %cst_55 = arith.constant 1.000000e+00 : f32
    %288 = vector.broadcast %cst_55 : f32 to vector<16x32xf32>
    %289 = arith.addf %288, %287 : vector<16x32xf32>
    %290 = arith.divf %288, %289 : vector<16x32xf32>
    %291 = arith.mulf %282, %266 : vector<16x32xf32>
    %292 = arith.mulf %276, %284 : vector<16x32xf32>
    %293 = arith.addf %291, %292 : vector<16x32xf32>
    %294 = math.tanh %293 : vector<16x32xf32>
    %295 = arith.mulf %290, %294 : vector<16x32xf32>
    %c7_i32_56 = arith.constant 7 : i32
    %296 = vector.broadcast %c7_i32_56 : i32 to vector<16x32xi32>
    %297 = arith.muli %19, %296 : vector<16x32xi32>
    %298 = arith.addi %16, %297 : vector<16x32xi32>
    %299 = arith.cmpi slt, %298, %10 : vector<16x32xi32>
    %300 = arith.select %299, %295, %265 : vector<16x32xi1>, vector<16x32xf32>
    %301 = arith.truncf %300 : vector<16x32xf32> to vector<16x32xbf16>
    %c0_57 = arith.constant 0 : index
    %c0_58 = arith.constant 0 : index
    %302 = vector.load %arg6[%c0_57, %c0_58] : memref<32x128xbf16, #tpu.memory_space<vmem>>, vector<32x128xbf16>
    %cst_59 = arith.constant dense<0.000000e+00> : vector<16x128xf32>
    %303 = tpu.matmul %301, %302, %cst_59 {dimension_numbers = #tpu.dot_dimension_numbers<[1], [0], [0], [1], [0, 0, 1, 1], [], []>} : vector<16x32xbf16>, vector<32x128xbf16>, vector<16x128xf32> -> vector<16x128xf32>
    %c0_60 = arith.constant 0 : index
    %c0_61 = arith.constant 0 : index
    %304 = vector.load %arg7[%c0_60, %c0_61] : memref<1x128xf32, #tpu.memory_space<vmem>>, vector<1x128xf32>
    %305 = vector.broadcast %304 : vector<1x128xf32> to vector<16x128xf32>
    %306 = arith.addf %303, %305 : vector<16x128xf32>
    %307 = math.tanh %306 : vector<16x128xf32>
    %c0_62 = arith.constant 0 : index
    %c0_63 = arith.constant 0 : index
    %308 = vector.load %arg8[%c0_62, %c0_63] : memref<16x128xf32, #tpu.memory_space<vmem>>, vector<16x128xf32>
    tpu.vector_store %arg8[%c0_62, %c0_63], %307 {strides = array<i32>} : memref<16x128xf32, #tpu.memory_space<vmem>>, vector<16x128xf32>,
    return
  }
  func.func @transform_0(%arg0: i32) -> (i32, i32) {
    %c0_i32 = arith.constant 0 : i32
    %c0_i32_0 = arith.constant 0 : i32
    return %arg0, %c0_i32 : i32, i32
  }
  func.func @transform_1(%arg0: i32) -> (i32, i32) {
    %c0_i32 = arith.constant 0 : i32
    %c0_i32_0 = arith.constant 0 : i32
    return %arg0, %c0_i32 : i32, i32
  }
  func.func @transform_2(%arg0: i32) -> (i32, i32) {
    %c0_i32 = arith.constant 0 : i32
    %c0_i32_0 = arith.constant 0 : i32
    %c0_i32_1 = arith.constant 0 : i32
    return %c0_i32, %c0_i32_0 : i32, i32
  }
  func.func @transform_3(%arg0: i32) -> (i32, i32) {
    %c0_i32 = arith.constant 0 : i32
    %c0_i32_0 = arith.constant 0 : i32
    %c0_i32_1 = arith.constant 0 : i32
    return %c0_i32, %c0_i32_0 : i32, i32
  }
  func.func @transform_4(%arg0: i32) -> (i32, i32) {
    %c0_i32 = arith.constant 0 : i32
    %c0_i32_0 = arith.constant 0 : i32
    %c0_i32_1 = arith.constant 0 : i32
    return %c0_i32, %c0_i32_0 : i32, i32
  }
  func.func @transform_5(%arg0: i32) -> (i32, i32) {
    %c0_i32 = arith.constant 0 : i32
    %c0_i32_0 = arith.constant 0 : i32
    %c0_i32_1 = arith.constant 0 : i32
    return %c0_i32, %c0_i32_0 : i32, i32
  }
  func.func @transform_6(%arg0: i32) -> (i32, i32) {
    %c0_i32 = arith.constant 0 : i32
    %c0_i32_0 = arith.constant 0 : i32
    %c0_i32_1 = arith.constant 0 : i32
    return %c0_i32, %c0_i32_0 : i32, i32
  }
  func.func @transform_7(%arg0: i32) -> (i32, i32) {
    %c0_i32 = arith.constant 0 : i32
    %c0_i32_0 = arith.constant 0 : i32
    return %arg0, %c0_i32 : i32, i32
  }
}

</mosaic_0001>

<llo_original>
// kernel: tpu_custom_call.1
$region0: #{tpu_custom_call.1}
  #allocation0 [shape = 'u32[]', space=smem, size = 0x4, offset = 0x4, fixed_abs, tag = 'smem constant byte address 0x4 - core index']
  #allocation1 [shape = 'u32[72,128]{1,0:T(1,128)}', space=vmem, size = 0x9000, scoped, tag = 'internal scratch']
  #allocation2 [shape = 'f32[16,1024]{1,0:T(8,128)}', space=vmem, size = 0x10000, scoped, tag = 'scratch operand']
  %s0 = inlined_call_operand.hbm [shape: bf16[16,128], index: 0, kind: input, shape index: {}]
  %s1 = inlined_call_operand.vmem [shape: s32[16,1], index: 1, kind: input, shape index: {}]
  %s2 = inlined_call_operand.hbm [shape: bf16[128,1024], index: 2, kind: input, shape index: {}]
  %s3 = inlined_call_operand.vmem [shape: bf16[32,128], index: 3, kind: input, shape index: {}]
  %s4 = inlined_call_operand.hbm [shape: f32[1,1024], index: 4, kind: input, shape index: {}]
  %s5 = inlined_call_operand.hbm [shape: bf16[32,128], index: 5, kind: input, shape index: {}]
  %s6 = inlined_call_operand.vmem [shape: f32[1,128], index: 6, kind: input, shape index: {}]
  %s7 = inlined_call_operand.hbm [shape: f32[16,128], index: 7, kind: output, shape index: {}]
  %s8 = sld [smem:[#allocation0]]
  $region54: #{tpu_custom_call.1} parent=0
    _
  %s10 = ssub.s32 1, %s8
  %s11 = scalar_select 0, %s10, %s8
  $region1: #{tpu_custom_call.1} parent=0
    #allocation3 [shape = 'u8[4096]{0}', space=vmem, size = 0x1000, scoped, tag = 'input window, operand 0, single buffered']
    #allocation4 [shape = 's32[1]{0}', space=sflag, size = 0x4, scoped, tag = 'scoped memory for tpu_custom_call.1']
    #allocation5 [shape = 's32[1]{0}', space=sflag, size = 0x4, scoped, tag = 'scoped memory for tpu_custom_call.1']
    #allocation6 [shape = 'u8[262144]{0}', space=vmem, size = 0x40000, scoped, tag = 'input window, operand 2, single buffered']
    #allocation7 [shape = 's32[1]{0}', space=sflag, size = 0x4, scoped, tag = 'scoped memory for tpu_custom_call.1']
    #allocation8 [shape = 'u8[4096]{0}', space=vmem, size = 0x1000, scoped, tag = 'input window, operand 4, single buffered']
    #allocation9 [shape = 'u8[8192]{0}', space=vmem, size = 0x2000, scoped, tag = 'input window, operand 5, single buffered']
    #allocation10 [shape = 's32[1]{0}', space=sflag, size = 0x4, scoped, tag = 'scoped memory for tpu_custom_call.1']
    #allocation11 [shape = 'u8[8192]{0}', space=vmem, size = 0x2000, scoped, tag = 'output window, operand 0, single buffered']
    %12 = vsyncpa [#allocation4], 0
    %13 = vsyncpa [#allocation7], 0
    %14 = vsyncpa [#allocation10], 0
    %15 = vsyncpa [#allocation5], 0
    // Predicated region
    $region2: #{tpu_custom_call.1} parent=1 // pred_check
      _
    $region3: #{tpu_custom_call.1} parent=1 // pred_check_branch
      %17 = sbr.rel (0) target = $region5
    $region4: #{tpu_custom_call.1} parent=1 // pred_region
      %19 = vsyncadd [#allocation4], 0
      %s20 = sshll.u32 %s0, 4
      %s21 = int_to_ptr.hbm [resolvable:$true] %s20
      %s22 = sshll.u32 [#allocation3], 4
      %s23 = int_to_ptr.vmem [resolvable:$true] %s22
      %28 = dma.hbm_to_vmem [thread:$0]  %s21, 128, %s23, [#allocation4], 64, 64, 4
    $region5: #{tpu_custom_call.1} parent=1 // pred_fallthru
      _
    // Predicated region
    $region6: #{tpu_custom_call.1} parent=1 // pred_check
      _
    $region7: #{tpu_custom_call.1} parent=1 // pred_check_branch
      %30 = sbr.rel (0) target = $region9
    $region8: #{tpu_custom_call.1} parent=1 // pred_region
      _
    $region9: #{tpu_custom_call.1} parent=1 // pred_fallthru
      _
    // Predicated region
    $region10: #{tpu_custom_call.1} parent=1 // pred_check
      _
    $region11: #{tpu_custom_call.1} parent=1 // pred_check_branch
      %32 = sbr.rel (0) target = $region13
    $region12: #{tpu_custom_call.1} parent=1 // pred_region
      %34 = vsyncadd [#allocation7], 0
      %s35 = sshll.u32 %s2, 4
      %s36 = int_to_ptr.hbm [resolvable:$true] %s35
      %s37 = sshll.u32 [#allocation6], 4
      %s38 = int_to_ptr.vmem [resolvable:$true] %s37
      %43 = dma.hbm_to_vmem [thread:$0]  %s36, 8192, %s38, [#allocation7], 512, 512, 32
    $region13: #{tpu_custom_call.1} parent=1 // pred_fallthru
      _
    // Predicated region
    $region14: #{tpu_custom_call.1} parent=1 // pred_check
      _
    $region15: #{tpu_custom_call.1} parent=1 // pred_check_branch
      %45 = sbr.rel (0) target = $region17
    $region16: #{tpu_custom_call.1} parent=1 // pred_region
      _
    $region17: #{tpu_custom_call.1} parent=1 // pred_fallthru
      _
    // Predicated region
    $region18: #{tpu_custom_call.1} parent=1 // pred_check
      _
    $region19: #{tpu_custom_call.1} parent=1 // pred_check_branch
      %47 = sbr.rel (0) target = $region21
    $region20: #{tpu_custom_call.1} parent=1 // pred_region
      %49 = vsyncadd [#allocation7], 0
      %s51 = sshll.u32 %s4, 4
      %s52 = int_to_ptr.hbm [resolvable:$true] %s51
      %s53 = sshll.u32 [#allocation8], 4
      %s54 = int_to_ptr.vmem [resolvable:$true] %s53
      %56 = dma.hbm_to_vmem [thread:$0]  %s52, 128, %s54, [#allocation7]
    $region21: #{tpu_custom_call.1} parent=1 // pred_fallthru
      _
    // Predicated region
    $region22: #{tpu_custom_call.1} parent=1 // pred_check
      _
    $region23: #{tpu_custom_call.1} parent=1 // pred_check_branch
      %58 = sbr.rel (0) target = $region25
    $region24: #{tpu_custom_call.1} parent=1 // pred_region
      %60 = vsyncadd [#allocation10], 0
      %s61 = sshll.u32 %s5, 4
      %s62 = int_to_ptr.hbm [resolvable:$true] %s61
      %s63 = sshll.u32 [#allocation9], 4
      %s64 = int_to_ptr.vmem [resolvable:$true] %s63
      %69 = dma.hbm_to_vmem [thread:$0]  %s62, 256, %s64, [#allocation10], 64, 64, 4
    $region25: #{tpu_custom_call.1} parent=1 // pred_fallthru
      _
    // Predicated region
    $region26: #{tpu_custom_call.1} parent=1 // pred_check
      _
    $region27: #{tpu_custom_call.1} parent=1 // pred_check_branch
      %71 = sbr.rel (0) target = $region29
    $region28: #{tpu_custom_call.1} parent=1 // pred_region
      _
    $region29: #{tpu_custom_call.1} parent=1 // pred_fallthru
      _
    // Predicated region
    $region30: #{tpu_custom_call.1} parent=1 // pred_check
      _
    $region31: #{tpu_custom_call.1} parent=1 // pred_check_branch
      %73 = sbr.rel (0) target = $region33
    $region32: #{tpu_custom_call.1} parent=1 // pred_region
      %75 = dma.done [#allocation4], 128
    $region33: #{tpu_custom_call.1} parent=1 // pred_fallthru
      _
    // Predicated region
    $region34: #{tpu_custom_call.1} parent=1 // pred_check
      _
    $region35: #{tpu_custom_call.1} parent=1 // pred_check_branch
      %77 = sbr.rel (0) target = $region37
    $region36: #{tpu_custom_call.1} parent=1 // pred_region
      %79 = dma.done [#allocation7], 8192
    $region37: #{tpu_custom_call.1} parent=1 // pred_fallthru
      _
    // Predicated region
    $region38: #{tpu_custom_call.1} parent=1 // pred_check
      _
    $region39: #{tpu_custom_call.1} parent=1 // pred_check_branch
      %81 = sbr.rel (0) target = $region41
    $region40: #{tpu_custom_call.1} parent=1 // pred_region
      %83 = dma.done [#allocation7], 128
    $region41: #{tpu_custom_call.1} parent=1 // pred_fallthru
      _
    // Predicated region
    $region42: #{tpu_custom_call.1} parent=1 // pred_check
      _
    $region43: #{tpu_custom_call.1} parent=1 // pred_check_branch
      %85 = sbr.rel (0) target = $region45
    $region44: #{tpu_custom_call.1} parent=1 // pred_region
      %87 = dma.done [#allocation10], 256
    $region45: #{tpu_custom_call.1} parent=1 // pred_fallthru
      _
    %v89 = vld [vmem:[%s3] sm:$0xf]
    %v90 = vld [vmem:[%s3 + $0x4] sm:$0xf]
    %v91 = vld [vmem:[%s3 + $0x8] sm:$0xf]
    %v92 = vld [vmem:[%s3 + $0xc] sm:$0xf]
    %v93 = vld [vmem:[#allocation3] sm:$0xf]
    %v94 = vld [vmem:[#allocation3 + $0x4] sm:$0xf]
    %v95 = vld [vmem:[#allocation6] sm:$0xff]
    %v96 = vld [vmem:[#allocation6 + $0x8] sm:$0xff]
    %v97 = vld [vmem:[#allocation6 + $0x10] sm:$0xff]
    %v98 = vld [vmem:[#allocation6 + $0x18] sm:$0xff]
    %v99 = vld [vmem:[#allocation6 + $0x20] sm:$0xff]
    %v100 = vld [vmem:[#allocation6 + $0x28] sm:$0xff]
    %v101 = vld [vmem:[#allocation6 + $0x30] sm:$0xff]
    %v102 = vld [vmem:[#allocation6 + $0x38] sm:$0xff]
    %v103 = vld [vmem:[#allocation6 + $0x40] sm:$0xff]
    %v104 = vld [vmem:[#allocation6 + $0x48] sm:$0xff]
    %v105 = vld [vmem:[#allocation6 + $0x50] sm:$0xff]
    %v106 = vld [vmem:[#allocation6 + $0x58] sm:$0xff]
    %v107 = vld [vmem:[#allocation6 + $0x60] sm:$0xff]
    %v108 = vld [vmem:[#allocation6 + $0x68] sm:$0xff]
    %v109 = vld [vmem:[#allocation6 + $0x70] sm:$0xff]
    %v110 = vld [vmem:[#allocation6 + $0x78] sm:$0xff]
    %v111 = vld [vmem:[#allocation6 + $0x80] sm:$0xff]
    %v112 = vld [vmem:[#allocation6 + $0x88] sm:$0xff]
    %v113 = vld [vmem:[#allocation6 + $0x90] sm:$0xff]
    %v114 = vld [vmem:[#allocation6 + $0x98] sm:$0xff]
    %v115 = vld [vmem:[#allocation6 + $0xa0] sm:$0xff]
    %v116 = vld [vmem:[#allocation6 + $0xa8] sm:$0xff]
    %v117 = vld [vmem:[#allocation6 + $0xb0] sm:$0xff]
    %v118 = vld [vmem:[#allocation6 + $0xb8] sm:$0xff]
    %v119 = vld [vmem:[#allocation6 + $0xc0] sm:$0xff]
    %v120 = vld [vmem:[#allocation6 + $0xc8] sm:$0xff]
    %v121 = vld [vmem:[#allocation6 + $0xd0] sm:$0xff]
    %v122 = vld [vmem:[#allocation6 + $0xd8] sm:$0xff]
    %v123 = vld [vmem:[#allocation6 + $0xe0] sm:$0xff]
    %v124 = vld [vmem:[#allocation6 + $0xe8] sm:$0xff]
    %v125 = vld [vmem:[#allocation6 + $0xf0] sm:$0xff]
    %v126 = vld [vmem:[#allocation6 + $0xf8] sm:$0xff]
    %v127 = vld [vmem:[#allocation6 + $0x100] sm:$0xff]
    %v128 = vld [vmem:[#allocation6 + $0x108] sm:$0xff]
    %v129 = vld [vmem:[#allocation6 + $0x110] sm:$0xff]
    %v130 = vld [vmem:[#allocation6 + $0x118] sm:$0xff]
    %v131 = vld [vmem:[#allocation6 + $0x120] sm:$0xff]
    %v132 = vld [vmem:[#allocation6 + $0x128] sm:$0xff]
    %v133 = vld [vmem:[#allocation6 + $0x130] sm:$0xff]
    %v134 = vld [vmem:[#allocation6 + $0x138] sm:$0xff]
    %v135 = vld [vmem:[#allocation6 + $0x140] sm:$0xff]
    %v136 = vld [vmem:[#allocation6 + $0x148] sm:$0xff]
    %v137 = vld [vmem:[#allocation6 + $0x150] sm:$0xff]
    %v138 = vld [vmem:[#allocation6 + $0x158] sm:$0xff]
    %v139 = vld [vmem:[#allocation6 + $0x160] sm:$0xff]
    %v140 = vld [vmem:[#allocation6 + $0x168] sm:$0xff]
    %v141 = vld [vmem:[#allocation6 + $0x170] sm:$0xff]
    %v142 = vld [vmem:[#allocation6 + $0x178] sm:$0xff]
    %v143 = vld [vmem:[#allocation6 + $0x180] sm:$0xff]
    %v144 = vld [vmem:[#allocation6 + $0x188] sm:$0xff]
    %v145 = vld [vmem:[#allocation6 + $0x190] sm:$0xff]
    %v146 = vld [vmem:[#allocation6 + $0x198] sm:$0xff]
    %v147 = vld [vmem:[#allocation6 + $0x1a0] sm:$0xff]
    %v148 = vld [vmem:[#allocation6 + $0x1a8] sm:$0xff]
    %v149 = vld [vmem:[#allocation6 + $0x1b0] sm:$0xff]
    %v150 = vld [vmem:[#allocation6 + $0x1b8] sm:$0xff]
    %v151 = vld [vmem:[#allocation6 + $0x1c0] sm:$0xff]
    %v152 = vld [vmem:[#allocation6 + $0x1c8] sm:$0xff]
    %v153 = vld [vmem:[#allocation6 + $0x1d0] sm:$0xff]
    %v154 = vld [vmem:[#allocation6 + $0x1d8] sm:$0xff]
    %v155 = vld [vmem:[#allocation6 + $0x1e0] sm:$0xff]
    %v156 = vld [vmem:[#allocation6 + $0x1e8] sm:$0xff]
    %v157 = vld [vmem:[#allocation6 + $0x1f0] sm:$0xff]
    %v158 = vld [vmem:[#allocation6 + $0x1f8] sm:$0xff]
    %v159 = vld [vmem:[#allocation8] sm:$0xff]
    %v161 = vperm.slane %v159, 0
    %v162 = vperm.slane %v159, 1
    %v163 = vperm.slane %v159, 2
    %v164 = vperm.slane %v159, 3
    %v165 = vperm.slane %v159, 4
    %v166 = vperm.slane %v159, 5
    %v167 = vperm.slane %v159, 6
    %v168 = vperm.slane %v159, 7
    %v179 = vunpack.c.l.b16 %v93
    %v180 = vunpack.c.l.b16 %v94
    %v181 = vpack.c.b16 %v180, %v179
    %v247 = vunpack.c.l.b16 %v95
    %v248 = vunpack.c.h.b16 %v95
    %v249 = vunpack.c.l.b16 %v96
    %v250 = vunpack.c.h.b16 %v96
    %v251 = vunpack.c.l.b16 %v97
    %v252 = vunpack.c.h.b16 %v97
    %v253 = vunpack.c.l.b16 %v98
    %v254 = vunpack.c.h.b16 %v98
    %v255 = vunpack.c.l.b16 %v99
    %v256 = vunpack.c.h.b16 %v99
    %v257 = vunpack.c.l.b16 %v100
    %v258 = vunpack.c.h.b16 %v100
    %v259 = vunpack.c.l.b16 %v101
    %v260 = vunpack.c.h.b16 %v101
    %v261 = vunpack.c.l.b16 %v102
    %v262 = vunpack.c.h.b16 %v102
    %v263 = vunpack.c.l.b16 %v103
    %v264 = vunpack.c.h.b16 %v103
    %v265 = vunpack.c.l.b16 %v104
    %v266 = vunpack.c.h.b16 %v104
    %v267 = vunpack.c.l.b16 %v105
    %v268 = vunpack.c.h.b16 %v105
    %v269 = vunpack.c.l.b16 %v106
    %v270 = vunpack.c.h.b16 %v106
    %v271 = vunpack.c.l.b16 %v107
    %v272 = vunpack.c.h.b16 %v107
    %v273 = vunpack.c.l.b16 %v108
    %v274 = vunpack.c.h.b16 %v108
    %v275 = vunpack.c.l.b16 %v109
    %v276 = vunpack.c.h.b16 %v109
    %v277 = vunpack.c.l.b16 %v110
    %v278 = vunpack.c.h.b16 %v110
    %v279 = vunpack.c.l.b16 %v111
    %v280 = vunpack.c.h.b16 %v111
    %v281 = vunpack.c.l.b16 %v112
    %v282 = vunpack.c.h.b16 %v112
    %v283 = vunpack.c.l.b16 %v113
    %v284 = vunpack.c.h.b16 %v113
    %v285 = vunpack.c.l.b16 %v114
    %v286 = vunpack.c.h.b16 %v114
    %v287 = vunpack.c.l.b16 %v115
    %v288 = vunpack.c.h.b16 %v115
    %v289 = vunpack.c.l.b16 %v116
    %v290 = vunpack.c.h.b16 %v116
    %v291 = vunpack.c.l.b16 %v117
    %v292 = vunpack.c.h.b16 %v117
    %v293 = vunpack.c.l.b16 %v118
    %v294 = vunpack.c.h.b16 %v118
    %v295 = vunpack.c.l.b16 %v119
    %v296 = vunpack.c.h.b16 %v119
    %v297 = vunpack.c.l.b16 %v120
    %v298 = vunpack.c.h.b16 %v120
    %v299 = vunpack.c.l.b16 %v121
    %v300 = vunpack.c.h.b16 %v121
    %v301 = vunpack.c.l.b16 %v122
    %v302 = vunpack.c.h.b16 %v122
    %v303 = vunpack.c.l.b16 %v123
    %v304 = vunpack.c.h.b16 %v123
    %v305 = vunpack.c.l.b16 %v124
    %v306 = vunpack.c.h.b16 %v124
    %v307 = vunpack.c.l.b16 %v125
    %v308 = vunpack.c.h.b16 %v125
    %v309 = vunpack.c.l.b16 %v126
    %v310 = vunpack.c.h.b16 %v126
    %v311 = vunpack.c.l.b16 %v127
    %v312 = vunpack.c.h.b16 %v127
    %v313 = vunpack.c.l.b16 %v128
    %v314 = vunpack.c.h.b16 %v128
    %v315 = vunpack.c.l.b16 %v129
    %v316 = vunpack.c.h.b16 %v129
    %v317 = vunpack.c.l.b16 %v130
    %v318 = vunpack.c.h.b16 %v130
    %v319 = vunpack.c.l.b16 %v131
    %v320 = vunpack.c.h.b16 %v131
    %v321 = vunpack.c.l.b16 %v132
    %v322 = vunpack.c.h.b16 %v132
    %v323 = vunpack.c.l.b16 %v133
    %v324 = vunpack.c.h.b16 %v133
    %v325 = vunpack.c.l.b16 %v134
    %v326 = vunpack.c.h.b16 %v134
    %v327 = vunpack.c.l.b16 %v135
    %v328 = vunpack.c.h.b16 %v135
    %v329 = vunpack.c.l.b16 %v136
    %v330 = vunpack.c.h.b16 %v136
    %v331 = vunpack.c.l.b16 %v137
    %v332 = vunpack.c.h.b16 %v137
    %v333 = vunpack.c.l.b16 %v138
    %v334 = vunpack.c.h.b16 %v138
    %v335 = vunpack.c.l.b16 %v139
    %v336 = vunpack.c.h.b16 %v139
    %v337 = vunpack.c.l.b16 %v140
    %v338 = vunpack.c.h.b16 %v140
    %v339 = vunpack.c.l.b16 %v141
    %v340 = vunpack.c.h.b16 %v141
    %v341 = vunpack.c.l.b16 %v142
    %v342 = vunpack.c.h.b16 %v142
    %v343 = vunpack.c.l.b16 %v143
    %v344 = vunpack.c.h.b16 %v143
    %v345 = vunpack.c.l.b16 %v144
    %v346 = vunpack.c.h.b16 %v144
    %v347 = vunpack.c.l.b16 %v145
    %v348 = vunpack.c.h.b16 %v145
    %v349 = vunpack.c.l.b16 %v146
    %v350 = vunpack.c.h.b16 %v146
    %v351 = vunpack.c.l.b16 %v147
    %v352 = vunpack.c.h.b16 %v147
    %v353 = vunpack.c.l.b16 %v148
    %v354 = vunpack.c.h.b16 %v148
    %v355 = vunpack.c.l.b16 %v149
    %v356 = vunpack.c.h.b16 %v149
    %v357 = vunpack.c.l.b16 %v150
    %v358 = vunpack.c.h.b16 %v150
    %v359 = vunpack.c.l.b16 %v151
    %v360 = vunpack.c.h.b16 %v151
    %v361 = vunpack.c.l.b16 %v152
    %v362 = vunpack.c.h.b16 %v152
    %v363 = vunpack.c.l.b16 %v153
    %v364 = vunpack.c.h.b16 %v153
    %v365 = vunpack.c.l.b16 %v154
    %v366 = vunpack.c.h.b16 %v154
    %v367 = vunpack.c.l.b16 %v155
    %v368 = vunpack.c.h.b16 %v155
    %v369 = vunpack.c.l.b16 %v156
    %v370 = vunpack.c.h.b16 %v156
    %v371 = vunpack.c.l.b16 %v157
    %v372 = vunpack.c.h.b16 %v157
    %v373 = vunpack.c.l.b16 %v158
    %v374 = vunpack.c.h.b16 %v158
    %v375 = vpack.c.b16 %v255, %v247
    %v376 = vpack.c.b16 %v256, %v248
    %v377 = vpack.c.b16 %v257, %v249
    %v378 = vpack.c.b16 %v258, %v250
    %v379 = vpack.c.b16 %v259, %v251
    %v380 = vpack.c.b16 %v260, %v252
    %v381 = vpack.c.b16 %v261, %v253
    %v382 = vpack.c.b16 %v262, %v254
    %v383 = vpack.c.b16 %v271, %v263
    %v384 = vpack.c.b16 %v272, %v264
    %v385 = vpack.c.b16 %v273, %v265
    %v386 = vpack.c.b16 %v274, %v266
    %v387 = vpack.c.b16 %v275, %v267
    %v388 = vpack.c.b16 %v276, %v268
    %v389 = vpack.c.b16 %v277, %v269
    %v390 = vpack.c.b16 %v278, %v270
    %v391 = vpack.c.b16 %v287, %v279
    %v392 = vpack.c.b16 %v288, %v280
    %v393 = vpack.c.b16 %v289, %v281
    %v394 = vpack.c.b16 %v290, %v282
    %v395 = vpack.c.b16 %v291, %v283
    %v396 = vpack.c.b16 %v292, %v284
    %v397 = vpack.c.b16 %v293, %v285
    %v398 = vpack.c.b16 %v294, %v286
    %v399 = vpack.c.b16 %v303, %v295
    %v400 = vpack.c.b16 %v304, %v296
    %v401 = vpack.c.b16 %v305, %v297
    %v402 = vpack.c.b16 %v306, %v298
    %v403 = vpack.c.b16 %v307, %v299
    %v404 = vpack.c.b16 %v308, %v300
    %v405 = vpack.c.b16 %v309, %v301
    %v406 = vpack.c.b16 %v310, %v302
    %v407 = vpack.c.b16 %v319, %v311
    %v408 = vpack.c.b16 %v320, %v312
    %v409 = vpack.c.b16 %v321, %v313
    %v410 = vpack.c.b16 %v322, %v314
    %v411 = vpack.c.b16 %v323, %v315
    %v412 = vpack.c.b16 %v324, %v316
    %v413 = vpack.c.b16 %v325, %v317
    %v414 = vpack.c.b16 %v326, %v318
    %v415 = vpack.c.b16 %v335, %v327
    %v416 = vpack.c.b16 %v336, %v328
    %v417 = vpack.c.b16 %v337, %v329
    %v418 = vpack.c.b16 %v338, %v330
    %v419 = vpack.c.b16 %v339, %v331
    %v420 = vpack.c.b16 %v340, %v332
    %v421 = vpack.c.b16 %v341, %v333
    %v422 = vpack.c.b16 %v342, %v334
    %v423 = vpack.c.b16 %v351, %v343
    %v424 = vpack.c.b16 %v352, %v344
    %v425 = vpack.c.b16 %v353, %v345
    %v426 = vpack.c.b16 %v354, %v346
    %v427 = vpack.c.b16 %v355, %v347
    %v428 = vpack.c.b16 %v356, %v348
    %v429 = vpack.c.b16 %v357, %v349
    %v430 = vpack.c.b16 %v358, %v350
    %v431 = vpack.c.b16 %v367, %v359
    %v432 = vpack.c.b16 %v368, %v360
    %v433 = vpack.c.b16 %v369, %v361
    %v434 = vpack.c.b16 %v370, %v362
    %v435 = vpack.c.b16 %v371, %v363
    %v436 = vpack.c.b16 %v372, %v364
    %v437 = vpack.c.b16 %v373, %v365
    %v438 = vpack.c.b16 %v374, %v366
    %503 = vmatpush.bf16.msra.mxu0 %v431
    %504 = vmatpush.bf16.msra.mxu0 %v423
    %505 = vmatpush.bf16.msra.mxu0 %v415
    %506 = vmatpush.bf16.msra.mxu0 %v407
    %507 = vmatpush.bf16.msra.mxu0 %v399
    %508 = vmatpush.bf16.msra.mxu0 %v391
    %509 = vmatpush.bf16.msra.mxu0 %v383
    %510 = vmatpush.bf16.msra.mxu0 %v375
    %511 = vmatmul.bf16.gmra.mxu0 %v181
    %v512 = vpop.f32.mrf.mxu0
    %v513 = vadd.f32 %v161, %v512
    %v514 = vpop.f32.mrf.mxu0
    %v515 = vadd.f32 %v161, %v514
    %516 = vdwg.mxu0
    %517 = vmatpush.bf16.msra.mxu0 %v432
    %518 = vmatpush.bf16.msra.mxu0 %v424
    %519 = vmatpush.bf16.msra.mxu0 %v416
    %520 = vmatpush.bf16.msra.mxu0 %v408
    %521 = vmatpush.bf16.msra.mxu0 %v400
    %522 = vmatpush.bf16.msra.mxu0 %v392
    %523 = vmatpush.bf16.msra.mxu0 %v384
    %524 = vmatpush.bf16.msra.mxu0 %v376
    %525 = vmatmul.bf16.gmra.mxu0 %v181
    %v526 = vpop.f32.mrf.mxu0
    %v527 = vadd.f32 %v162, %v526
    %v528 = vpop.f32.mrf.mxu0
    %v529 = vadd.f32 %v162, %v528
    %530 = vdwg.mxu0
    %531 = vmatpush.bf16.msra.mxu0 %v433
    %532 = vmatpush.bf16.msra.mxu0 %v425
    %533 = vmatpush.bf16.msra.mxu0 %v417
    %534 = vmatpush.bf16.msra.mxu0 %v409
    %535 = vmatpush.bf16.msra.mxu0 %v401
    %536 = vmatpush.bf16.msra.mxu0 %v393
    %537 = vmatpush.bf16.msra.mxu0 %v385
    %538 = vmatpush.bf16.msra.mxu0 %v377
    %539 = vmatmul.bf16.gmra.mxu0 %v181
    %v540 = vpop.f32.mrf.mxu0
    %v541 = vadd.f32 %v163, %v540
    %v542 = vpop.f32.mrf.mxu0
    %v543 = vadd.f32 %v163, %v542
    %544 = vdwg.mxu0
    %545 = vmatpush.bf16.msra.mxu0 %v434
    %546 = vmatpush.bf16.msra.mxu0 %v426
    %547 = vmatpush.bf16.msra.mxu0 %v418
    %548 = vmatpush.bf16.msra.mxu0 %v410
    %549 = vmatpush.bf16.msra.mxu0 %v402
    %550 = vmatpush.bf16.msra.mxu0 %v394
    %551 = vmatpush.bf16.msra.mxu0 %v386
    %552 = vmatpush.bf16.msra.mxu0 %v378
    %553 = vmatmul.bf16.gmra.mxu0 %v181
    %v554 = vpop.f32.mrf.mxu0
    %v555 = vadd.f32 %v164, %v554
    %v556 = vpop.f32.mrf.mxu0
    %v557 = vadd.f32 %v164, %v556
    %558 = vdwg.mxu0
    %559 = vmatpush.bf16.msra.mxu0 %v435
    %560 = vmatpush.bf16.msra.mxu0 %v427
    %561 = vmatpush.bf16.msra.mxu0 %v419
    %562 = vmatpush.bf16.msra.mxu0 %v411
    %563 = vmatpush.bf16.msra.mxu0 %v403
    %564 = vmatpush.bf16.msra.mxu0 %v395
    %565 = vmatpush.bf16.msra.mxu0 %v387
    %566 = vmatpush.bf16.msra.mxu0 %v379
    %567 = vmatmul.bf16.gmra.mxu0 %v181
    %v568 = vpop.f32.mrf.mxu0
    %v569 = vadd.f32 %v165, %v568
    %v570 = vpop.f32.mrf.mxu0
    %v571 = vadd.f32 %v165, %v570
    %572 = vdwg.mxu0
    %573 = vmatpush.bf16.msra.mxu0 %v436
    %574 = vmatpush.bf16.msra.mxu0 %v428
    %575 = vmatpush.bf16.msra.mxu0 %v420
    %576 = vmatpush.bf16.msra.mxu0 %v412
    %577 = vmatpush.bf16.msra.mxu0 %v404
    %578 = vmatpush.bf16.msra.mxu0 %v396
    %579 = vmatpush.bf16.msra.mxu0 %v388
    %580 = vmatpush.bf16.msra.mxu0 %v380
    %581 = vmatmul.bf16.gmra.mxu0 %v181
    %v582 = vpop.f32.mrf.mxu0
    %v583 = vadd.f32 %v166, %v582
    %v584 = vpop.f32.mrf.mxu0
    %v585 = vadd.f32 %v166, %v584
    %586 = vdwg.mxu0
    %587 = vmatpush.bf16.msra.mxu0 %v437
    %588 = vmatpush.bf16.msra.mxu0 %v429
    %589 = vmatpush.bf16.msra.mxu0 %v421
    %590 = vmatpush.bf16.msra.mxu0 %v413
    %591 = vmatpush.bf16.msra.mxu0 %v405
    %592 = vmatpush.bf16.msra.mxu0 %v397
    %593 = vmatpush.bf16.msra.mxu0 %v389
    %594 = vmatpush.bf16.msra.mxu0 %v381
    %595 = vmatmul.bf16.gmra.mxu0 %v181
    %v596 = vpop.f32.mrf.mxu0
    %v597 = vadd.f32 %v167, %v596
    %v598 = vpop.f32.mrf.mxu0
    %v599 = vadd.f32 %v167, %v598
    %600 = vdwg.mxu0
    %601 = vmatpush.bf16.msra.mxu0 %v438
    %602 = vmatpush.bf16.msra.mxu0 %v430
    %603 = vmatpush.bf16.msra.mxu0 %v422
    %604 = vmatpush.bf16.msra.mxu0 %v414
    %605 = vmatpush.bf16.msra.mxu0 %v406
    %606 = vmatpush.bf16.msra.mxu0 %v398
    %607 = vmatpush.bf16.msra.mxu0 %v390
    %608 = vmatpush.bf16.msra.mxu0 %v382
    %609 = vmatmul.bf16.gmra.mxu0 %v181
    %v610 = vpop.f32.mrf.mxu0
    %v611 = vadd.f32 %v168, %v610
    %v612 = vpop.f32.mrf.mxu0
    %v613 = vadd.f32 %v168, %v612
    %614 = vdwg.mxu0
    %615 = vst [vmem:[#allocation2] sm:$0xff] %v513
    %616 = vst [vmem:[#allocation2 + $0x8] sm:$0xff] %v527
    %617 = vst [vmem:[#allocation2 + $0x10] sm:$0xff] %v541
    %618 = vst [vmem:[#allocation2 + $0x18] sm:$0xff] %v555
    %619 = vst [vmem:[#allocation2 + $0x20] sm:$0xff] %v569
    %620 = vst [vmem:[#allocation2 + $0x28] sm:$0xff] %v583
    %621 = vst [vmem:[#allocation2 + $0x30] sm:$0xff] %v597
    %622 = vst [vmem:[#allocation2 + $0x38] sm:$0xff] %v611
    %623 = vst [vmem:[#allocation2 + $0x40] sm:$0xff] %v515
    %624 = vst [vmem:[#allocation2 + $0x48] sm:$0xff] %v529
    %625 = vst [vmem:[#allocation2 + $0x50] sm:$0xff] %v543
    %626 = vst [vmem:[#allocation2 + $0x58] sm:$0xff] %v557
    %627 = vst [vmem:[#allocation2 + $0x60] sm:$0xff] %v571
    %628 = vst [vmem:[#allocation2 + $0x68] sm:$0xff] %v585
    %629 = vst [vmem:[#allocation2 + $0x70] sm:$0xff] %v599
    %630 = vst [vmem:[#allocation2 + $0x78] sm:$0xff] %v613
    %v631 = vld [vmem:[%s1] sm:$0xff]
    %v632 = vld [vmem:[%s1 + $0x8] sm:$0xff]
    %633 = vset.pattern.permute.xlu0 0
    %634 = vperm.xlu0 %633, %v631
    %v635 = vpop.permute.xlu0 %634
    %636 = vset.pattern.permute.xlu0 0
    %637 = vperm.xlu0 %636, %v632
    %v638 = vpop.permute.xlu0 %637
    %v639 = vlaneseq
    %v640 = vand.u32 %v639, 127
    %vm641 = vcmp.lt.s32.totalorder %v640, 16
    %v642 = vsel %vm641, 0, 7
    %v643 = vsel %vm641, 1, 4294967295
    %v644 = vld [vmem:[#allocation2] sm:$0xff]
    %v645 = vld [vmem:[#allocation2 + $0x40] sm:$0xff]
    %v650 = vunpack.c.l.b16 %v89
    %v651 = vunpack.c.l.b16 %v90
    %v652 = vunpack.c.l.b16 %v91
    %v653 = vunpack.c.l.b16 %v92
    %v654 = vpack.c.b16 %v651, %v650
    %v655 = vpack.c.b16 %v653, %v652
    %vm658 = vcmask 261120
    %v660 = vsel %vm658, 0, 0
    %662 = vmatpush.bf16.msra.mxu0 0
    %663 = vmatpush.bf16.msra.mxu0 0
    %664 = vmatpush.bf16.msra.mxu0 0
    %665 = vmatpush.bf16.msra.mxu0 0
    %666 = vmatpush.bf16.msra.mxu0 0
    %667 = vmatpush.bf16.msra.mxu0 0
    %668 = vmatpush.bf16.msra.mxu0 %v655
    %669 = vmatpush.bf16.msra.mxu0 %v654
    %670 = vmatmul.bf16.gmra.mxu0 %v660
    %v671 = vpop.f32.mrf.mxu0
    %v672 = vadd.f32 0.0, %v671
    %v673 = vpop.f32.mrf.mxu0
    %v674 = vadd.f32 0.0, %v673
    %675 = vdwg.mxu0
    %v676 = vadd.f32 %v644, %v672
    %v677 = vadd.f32 %v645, %v674
    %v678 = vxor.u32 %v676, 2147483648
    %v679 = vxor.u32 %v677, 2147483648
    %v680 = vmul.f32 %v678, 1.442695
    %v681 = vpow.pop %v680
    %v682 = vmul.f32 %v679, 1.442695
    %v683 = vpow.pop %v682
    %v684 = vadd.f32 %v681, 1.0
    %v685 = vadd.f32 %v683, 1.0
    %v686 = vrcp.pop %v684
    %v687 = vmul.f32 %v684, %v686
    %v688 = vsub.f32 1.0, %v687
    %v689 = vmul.f32 %v686, %v688
    %v690 = vadd.f32 %v686, %v689
    %vm691 = vweird.f32 %v684
    %vm692 = vweird.f32 %v686
    %vm693 = vmor %vm691, %vm692
    %v694 = vsel %vm693, %v686, %v690
    %v695 = vand.u32 2147483647, %v684
    %vm696 = vcmp.eq.f32.partialorder %v695, 8.507059e+37
    %v697 = vand.u32 %v684, 2147483648
    %v698 = vor.u32 1.1754944e-38, %v697
    %v699 = vsel %vm696, %v698, %v694
    %v700 = vmul.f32 1.0, %v699
    %v701 = vrcp.pop %v685
    %v702 = vmul.f32 %v685, %v701
    %v703 = vsub.f32 1.0, %v702
    %v704 = vmul.f32 %v701, %v703
    %v705 = vadd.f32 %v701, %v704
    %vm706 = vweird.f32 %v685
    %vm707 = vweird.f32 %v701
    %vm708 = vmor %vm706, %vm707
    %v709 = vsel %vm708, %v701, %v705
    %v710 = vand.u32 2147483647, %v685
    %vm711 = vcmp.eq.f32.partialorder %v710, 8.507059e+37
    %v712 = vand.u32 %v685, 2147483648
    %v713 = vor.u32 1.1754944e-38, %v712
    %v714 = vsel %vm711, %v713, %v709
    %v715 = vmul.f32 1.0, %v714
    %v716 = vtanh.pop %v676
    %v717 = vtanh.pop %v677
    %v718 = vmul.f32 %v700, 0.0
    %v719 = vmul.f32 %v715, 0.0
    %722 = vrot.lane.b32.xlu0 %v716, 64
    %v723 = vpop.permute.xlu0 %722
    %724 = vrot.lane.b32.xlu0 %v717, 64
    %v725 = vpop.permute.xlu0 %724
    %v728 = vmul.f32 %v700, %v723
    %v729 = vmul.f32 %v715, %v725
    %732 = vrot.lane.b32.xlu0 %v728, 32
    %v733 = vpop.permute.xlu0 %732
    %734 = vrot.lane.b32.xlu0 %v729, 32
    %v735 = vpop.permute.xlu0 %734
    %v738 = vadd.f32 %v718, %v733
    %v739 = vadd.f32 %v719, %v735
    %v740 = vtanh.pop %v738
    %v741 = vtanh.pop %v739
    %744 = vrot.lane.b32.xlu0 %v740, 64
    %v745 = vpop.permute.xlu0 %744
    %746 = vrot.lane.b32.xlu0 %v741, 64
    %v747 = vpop.permute.xlu0 %746
    %v750 = vmul.f32 %v700, %v745
    %v751 = vmul.f32 %v715, %v747
    %vm752 = vcmp.lt.s32.totalorder %v642, %v635
    %vm753 = vcmp.lt.s32.totalorder %v642, %v638
    %756 = vrot.lane.b32.xlu0 %v750, 32
    %v757 = vpop.permute.xlu0 %756
    %758 = vrot.lane.b32.xlu0 %v751, 32
    %v759 = vpop.permute.xlu0 %758
    %v762 = vsel %vm752, %v757, 0.0
    %v763 = vsel %vm753, %v759, 0.0
    %766 = vrot.lane.b32.xlu0 %v738, 96
    %v767 = vpop.permute.xlu0 %766
    %768 = vrot.lane.b32.xlu0 %v739, 96
    %v769 = vpop.permute.xlu0 %768
    %v772 = vsel %vm752, %v767, 0.0
    %v773 = vsel %vm753, %v769, 0.0
    %v774 = vld [vmem:[#allocation2 + $0x8] sm:$0xff]
    %v775 = vld [vmem:[#allocation2 + $0x48] sm:$0xff]
    %v776 = vpack.c.bf16 %v763, %v762
    %v778 = vsel %vm658, %v776, 0
    %780 = vmatpush.bf16.msra.mxu0 0
    %781 = vmatpush.bf16.msra.mxu0 0
    %782 = vmatpush.bf16.msra.mxu0 0
    %783 = vmatpush.bf16.msra.mxu0 0
    %784 = vmatpush.bf16.msra.mxu0 0
    %785 = vmatpush.bf16.msra.mxu0 0
    %786 = vmatpush.bf16.msra.mxu0 %v655
    %787 = vmatpush.bf16.msra.mxu0 %v654
    %788 = vmatmul.bf16.gmra.mxu0 %v778
    %v789 = vpop.f32.mrf.mxu0
    %v790 = vadd.f32 0.0, %v789
    %v791 = vpop.f32.mrf.mxu0
    %v792 = vadd.f32 0.0, %v791
    %793 = vdwg.mxu0
    %v794 = vadd.f32 %v774, %v790
    %v795 = vadd.f32 %v775, %v792
    %v796 = vxor.u32 %v794, 2147483648
    %v797 = vxor.u32 %v795, 2147483648
    %v798 = vmul.f32 %v796, 1.442695
    %v799 = vpow.pop %v798
    %v800 = vmul.f32 %v797, 1.442695
    %v801 = vpow.pop %v800
    %v802 = vadd.f32 %v799, 1.0
    %v803 = vadd.f32 %v801, 1.0
    %v804 = vrcp.pop %v802
    %v805 = vmul.f32 %v802, %v804
    %v806 = vsub.f32 1.0, %v805
    %v807 = vmul.f32 %v804, %v806
    %v808 = vadd.f32 %v804, %v807
    %vm809 = vweird.f32 %v802
    %vm810 = vweird.f32 %v804
    %vm811 = vmor %vm809, %vm810
    %v812 = vsel %vm811, %v804, %v808
    %v813 = vand.u32 2147483647, %v802
    %vm814 = vcmp.eq.f32.partialorder %v813, 8.507059e+37
    %v815 = vand.u32 %v802, 2147483648
    %v816 = vor.u32 1.1754944e-38, %v815
    %v817 = vsel %vm814, %v816, %v812
    %v818 = vmul.f32 1.0, %v817
    %v819 = vrcp.pop %v803
    %v820 = vmul.f32 %v803, %v819
    %v821 = vsub.f32 1.0, %v820
    %v822 = vmul.f32 %v819, %v821
    %v823 = vadd.f32 %v819, %v822
    %vm824 = vweird.f32 %v803
    %vm825 = vweird.f32 %v819
    %vm826 = vmor %vm824, %vm825
    %v827 = vsel %vm826, %v819, %v823
    %v828 = vand.u32 2147483647, %v803
    %vm829 = vcmp.eq.f32.partialorder %v828, 8.507059e+37
    %v830 = vand.u32 %v803, 2147483648
    %v831 = vor.u32 1.1754944e-38, %v830
    %v832 = vsel %vm829, %v831, %v827
    %v833 = vmul.f32 1.0, %v832
    %v834 = vtanh.pop %v794
    %v835 = vtanh.pop %v795
    %838 = vrot.lane.b32.xlu0 %v772, 32
    %v839 = vpop.permute.xlu0 %838
    %840 = vrot.lane.b32.xlu0 %v773, 32
    %v841 = vpop.permute.xlu0 %840
    %v844 = vmul.f32 %v818, %v839
    %v845 = vmul.f32 %v833, %v841
    %848 = vrot.lane.b32.xlu0 %v834, 64
    %v849 = vpop.permute.xlu0 %848
    %850 = vrot.lane.b32.xlu0 %v835, 64
    %v851 = vpop.permute.xlu0 %850
    %v854 = vmul.f32 %v818, %v849
    %v855 = vmul.f32 %v833, %v851
    %858 = vrot.lane.b32.xlu0 %v854, 32
    %v859 = vpop.permute.xlu0 %858
    %860 = vrot.lane.b32.xlu0 %v855, 32
    %v861 = vpop.permute.xlu0 %860
    %v864 = vadd.f32 %v844, %v859
    %v865 = vadd.f32 %v845, %v861
    %v866 = vtanh.pop %v864
    %v867 = vtanh.pop %v865
    %870 = vrot.lane.b32.xlu0 %v866, 64
    %v871 = vpop.permute.xlu0 %870
    %872 = vrot.lane.b32.xlu0 %v867, 64
    %v873 = vpop.permute.xlu0 %872
    %v876 = vmul.f32 %v818, %v871
    %v877 = vmul.f32 %v833, %v873
    %v878 = vadd.s32 %v642, %v643
    %vm879 = vcmp.lt.s32.totalorder %v878, %v635
    %vm880 = vcmp.lt.s32.totalorder %v878, %v638
    %883 = vrot.lane.b32.xlu0 %v876, 32
    %v884 = vpop.permute.xlu0 %883
    %885 = vrot.lane.b32.xlu0 %v877, 32
    %v886 = vpop.permute.xlu0 %885
    %v889 = vsel %vm879, %v884, %v762
    %v890 = vsel %vm880, %v886, %v763
    %893 = vrot.lane.b32.xlu0 %v864, 96
    %v894 = vpop.permute.xlu0 %893
    %895 = vrot.lane.b32.xlu0 %v865, 96
    %v896 = vpop.permute.xlu0 %895
    %v899 = vsel %vm879, %v894, %v772
    %v900 = vsel %vm880, %v896, %v773
    %v901 = vld [vmem:[#allocation2 + $0x10] sm:$0xff]
    %v902 = vld [vmem:[#allocation2 + $0x50] sm:$0xff]
    %v903 = vpack.c.bf16 %v890, %v889
    %v905 = vsel %vm658, %v903, 0
    %907 = vmatpush.bf16.msra.mxu0 0
    %908 = vmatpush.bf16.msra.mxu0 0
    %909 = vmatpush.bf16.msra.mxu0 0
    %910 = vmatpush.bf16.msra.mxu0 0
    %911 = vmatpush.bf16.msra.mxu0 0
    %912 = vmatpush.bf16.msra.mxu0 0
    %913 = vmatpush.bf16.msra.mxu0 %v655
    %914 = vmatpush.bf16.msra.mxu0 %v654
    %915 = vmatmul.bf16.gmra.mxu0 %v905
    %v916 = vpop.f32.mrf.mxu0
    %v917 = vadd.f32 0.0, %v916
    %v918 = vpop.f32.mrf.mxu0
    %v919 = vadd.f32 0.0, %v918
    %920 = vdwg.mxu0
    %v921 = vadd.f32 %v901, %v917
    %v922 = vadd.f32 %v902, %v919
    %v923 = vxor.u32 %v921, 2147483648
    %v924 = vxor.u32 %v922, 2147483648
    %v925 = vmul.f32 %v923, 1.442695
    %v926 = vpow.pop %v925
    %v927 = vmul.f32 %v924, 1.442695
    %v928 = vpow.pop %v927
    %v929 = vadd.f32 %v926, 1.0
    %v930 = vadd.f32 %v928, 1.0
    %v931 = vrcp.pop %v929
    %v932 = vmul.f32 %v929, %v931
    %v933 = vsub.f32 1.0, %v932
    %v934 = vmul.f32 %v931, %v933
    %v935 = vadd.f32 %v931, %v934
    %vm936 = vweird.f32 %v929
    %vm937 = vweird.f32 %v931
    %vm938 = vmor %vm936, %vm937
    %v939 = vsel %vm938, %v931, %v935
    %v940 = vand.u32 2147483647, %v929
    %vm941 = vcmp.eq.f32.partialorder %v940, 8.507059e+37
    %v942 = vand.u32 %v929, 2147483648
    %v943 = vor.u32 1.1754944e-38, %v942
    %v944 = vsel %vm941, %v943, %v939
    %v945 = vmul.f32 1.0, %v944
    %v946 = vrcp.pop %v930
    %v947 = vmul.f32 %v930, %v946
    %v948 = vsub.f32 1.0, %v947
    %v949 = vmul.f32 %v946, %v948
    %v950 = vadd.f32 %v946, %v949
    %vm951 = vweird.f32 %v930
    %vm952 = vweird.f32 %v946
    %vm953 = vmor %vm951, %vm952
    %v954 = vsel %vm953, %v946, %v950
    %v955 = vand.u32 2147483647, %v930
    %vm956 = vcmp.eq.f32.partialorder %v955, 8.507059e+37
    %v957 = vand.u32 %v930, 2147483648
    %v958 = vor.u32 1.1754944e-38, %v957
    %v959 = vsel %vm956, %v958, %v954
    %v960 = vmul.f32 1.0, %v959
    %v961 = vtanh.pop %v921
    %v962 = vtanh.pop %v922
    %965 = vrot.lane.b32.xlu0 %v899, 32
    %v966 = vpop.permute.xlu0 %965
    %967 = vrot.lane.b32.xlu0 %v900, 32
    %v968 = vpop.permute.xlu0 %967
    %v971 = vmul.f32 %v945, %v966
    %v972 = vmul.f32 %v960, %v968
    %975 = vrot.lane.b32.xlu0 %v961, 64
    %v976 = vpop.permute.xlu0 %975
    %977 = vrot.lane.b32.xlu0 %v962, 64
    %v978 = vpop.permute.xlu0 %977
    %v981 = vmul.f32 %v945, %v976
    %v982 = vmul.f32 %v960, %v978
    %985 = vrot.lane.b32.xlu0 %v981, 32
    %v986 = vpop.permute.xlu0 %985
    %987 = vrot.lane.b32.xlu0 %v982, 32
    %v988 = vpop.permute.xlu0 %987
    %v991 = vadd.f32 %v971, %v986
    %v992 = vadd.f32 %v972, %v988
    %v993 = vtanh.pop %v991
    %v994 = vtanh.pop %v992
    %997 = vrot.lane.b32.xlu0 %v993, 64
    %v998 = vpop.permute.xlu0 %997
    %999 = vrot.lane.b32.xlu0 %v994, 64
    %v1000 = vpop.permute.xlu0 %999
    %v1003 = vmul.f32 %v945, %v998
    %v1004 = vmul.f32 %v960, %v1000
    %v1005 = vmul.u32 %v643, 2
    %v1006 = vadd.s32 %v642, %v1005
    %vm1007 = vcmp.lt.s32.totalorder %v1006, %v635
    %vm1008 = vcmp.lt.s32.totalorder %v1006, %v638
    %1011 = vrot.lane.b32.xlu0 %v1003, 32
    %v1012 = vpop.permute.xlu0 %1011
    %1013 = vrot.lane.b32.xlu0 %v1004, 32
    %v1014 = vpop.permute.xlu0 %1013
    %v1017 = vsel %vm1007, %v1012, %v889
    %v1018 = vsel %vm1008, %v1014, %v890
    %1021 = vrot.lane.b32.xlu0 %v991, 96
    %v1022 = vpop.permute.xlu0 %1021
    %1023 = vrot.lane.b32.xlu0 %v992, 96
    %v1024 = vpop.permute.xlu0 %1023
    %v1027 = vsel %vm1007, %v1022, %v899
    %v1028 = vsel %vm1008, %v1024, %v900
    %v1029 = vld [vmem:[#allocation2 + $0x18] sm:$0xff]
    %v1030 = vld [vmem:[#allocation2 + $0x58] sm:$0xff]
    %v1031 = vpack.c.bf16 %v1018, %v1017
    %v1033 = vsel %vm658, %v1031, 0
    %1035 = vmatpush.bf16.msra.mxu0 0
    %1036 = vmatpush.bf16.msra.mxu0 0
    %1037 = vmatpush.bf16.msra.mxu0 0
    %1038 = vmatpush.bf16.msra.mxu0 0
    %1039 = vmatpush.bf16.msra.mxu0 0
    %1040 = vmatpush.bf16.msra.mxu0 0
    %1041 = vmatpush.bf16.msra.mxu0 %v655
    %1042 = vmatpush.bf16.msra.mxu0 %v654
    %1043 = vmatmul.bf16.gmra.mxu0 %v1033
    %v1044 = vpop.f32.mrf.mxu0
    %v1045 = vadd.f32 0.0, %v1044
    %v1046 = vpop.f32.mrf.mxu0
    %v1047 = vadd.f32 0.0, %v1046
    %1048 = vdwg.mxu0
    %v1049 = vadd.f32 %v1029, %v1045
    %v1050 = vadd.f32 %v1030, %v1047
    %v1051 = vxor.u32 %v1049, 2147483648
    %v1052 = vxor.u32 %v1050, 2147483648
    %v1053 = vmul.f32 %v1051, 1.442695
    %v1054 = vpow.pop %v1053
    %v1055 = vmul.f32 %v1052, 1.442695
    %v1056 = vpow.pop %v1055
    %v1057 = vadd.f32 %v1054, 1.0
    %v1058 = vadd.f32 %v1056, 1.0
    %v1059 = vrcp.pop %v1057
    %v1060 = vmul.f32 %v1057, %v1059
    %v1061 = vsub.f32 1.0, %v1060
    %v1062 = vmul.f32 %v1059, %v1061
    %v1063 = vadd.f32 %v1059, %v1062
    %vm1064 = vweird.f32 %v1057
    %vm1065 = vweird.f32 %v1059
    %vm1066 = vmor %vm1064, %vm1065
    %v1067 = vsel %vm1066, %v1059, %v1063
    %v1068 = vand.u32 2147483647, %v1057
    %vm1069 = vcmp.eq.f32.partialorder %v1068, 8.507059e+37
    %v1070 = vand.u32 %v1057, 2147483648
    %v1071 = vor.u32 1.1754944e-38, %v1070
    %v1072 = vsel %vm1069, %v1071, %v1067
    %v1073 = vmul.f32 1.0, %v1072
    %v1074 = vrcp.pop %v1058
    %v1075 = vmul.f32 %v1058, %v1074
    %v1076 = vsub.f32 1.0, %v1075
    %v1077 = vmul.f32 %v1074, %v1076
    %v1078 = vadd.f32 %v1074, %v1077
    %vm1079 = vweird.f32 %v1058
    %vm1080 = vweird.f32 %v1074
    %vm1081 = vmor %vm1079, %vm1080
    %v1082 = vsel %vm1081, %v1074, %v1078
    %v1083 = vand.u32 2147483647, %v1058
    %vm1084 = vcmp.eq.f32.partialorder %v1083, 8.507059e+37
    %v1085 = vand.u32 %v1058, 2147483648
    %v1086 = vor.u32 1.1754944e-38, %v1085
    %v1087 = vsel %vm1084, %v1086, %v1082
    %v1088 = vmul.f32 1.0, %v1087
    %v1089 = vtanh.pop %v1049
    %v1090 = vtanh.pop %v1050
    %1093 = vrot.lane.b32.xlu0 %v1027, 32
    %v1094 = vpop.permute.xlu0 %1093
    %1095 = vrot.lane.b32.xlu0 %v1028, 32
    %v1096 = vpop.permute.xlu0 %1095
    %v1099 = vmul.f32 %v1073, %v1094
    %v1100 = vmul.f32 %v1088, %v1096
    %1103 = vrot.lane.b32.xlu0 %v1089, 64
    %v1104 = vpop.permute.xlu0 %1103
    %1105 = vrot.lane.b32.xlu0 %v1090, 64
    %v1106 = vpop.permute.xlu0 %1105
    %v1109 = vmul.f32 %v1073, %v1104
    %v1110 = vmul.f32 %v1088, %v1106
    %1113 = vrot.lane.b32.xlu0 %v1109, 32
    %v1114 = vpop.permute.xlu0 %1113
    %1115 = vrot.lane.b32.xlu0 %v1110, 32
    %v1116 = vpop.permute.xlu0 %1115
    %v1119 = vadd.f32 %v1099, %v1114
    %v1120 = vadd.f32 %v1100, %v1116
    %v1121 = vtanh.pop %v1119
    %v1122 = vtanh.pop %v1120
    %1125 = vrot.lane.b32.xlu0 %v1121, 64
    %v1126 = vpop.permute.xlu0 %1125
    %1127 = vrot.lane.b32.xlu0 %v1122, 64
    %v1128 = vpop.permute.xlu0 %1127
    %v1131 = vmul.f32 %v1073, %v1126
    %v1132 = vmul.f32 %v1088, %v1128
    %v1133 = vmul.u32 %v643, 3
    %v1134 = vadd.s32 %v642, %v1133
    %vm1135 = vcmp.lt.s32.totalorder %v1134, %v635
    %vm1136 = vcmp.lt.s32.totalorder %v1134, %v638
    %1139 = vrot.lane.b32.xlu0 %v1131, 32
    %v1140 = vpop.permute.xlu0 %1139
    %1141 = vrot.lane.b32.xlu0 %v1132, 32
    %v1142 = vpop.permute.xlu0 %1141
    %v1145 = vsel %vm1135, %v1140, %v1017
    %v1146 = vsel %vm1136, %v1142, %v1018
    %1149 = vrot.lane.b32.xlu0 %v1119, 96
    %v1150 = vpop.permute.xlu0 %1149
    %1151 = vrot.lane.b32.xlu0 %v1120, 96
    %v1152 = vpop.permute.xlu0 %1151
    %v1155 = vsel %vm1135, %v1150, %v1027
    %v1156 = vsel %vm1136, %v1152, %v1028
    %v1157 = vld [vmem:[#allocation2 + $0x20] sm:$0xff]
    %v1158 = vld [vmem:[#allocation2 + $0x60] sm:$0xff]
    %v1159 = vpack.c.bf16 %v1146, %v1145
    %v1161 = vsel %vm658, %v1159, 0
    %1163 = vmatpush.bf16.msra.mxu0 0
    %1164 = vmatpush.bf16.msra.mxu0 0
    %1165 = vmatpush.bf16.msra.mxu0 0
    %1166 = vmatpush.bf16.msra.mxu0 0
    %1167 = vmatpush.bf16.msra.mxu0 0
    %1168 = vmatpush.bf16.msra.mxu0 0
    %1169 = vmatpush.bf16.msra.mxu0 %v655
    %1170 = vmatpush.bf16.msra.mxu0 %v654
    %1171 = vmatmul.bf16.gmra.mxu0 %v1161
    %v1172 = vpop.f32.mrf.mxu0
    %v1173 = vadd.f32 0.0, %v1172
    %v1174 = vpop.f32.mrf.mxu0
    %v1175 = vadd.f32 0.0, %v1174
    %1176 = vdwg.mxu0
    %v1177 = vadd.f32 %v1157, %v1173
    %v1178 = vadd.f32 %v1158, %v1175
    %v1179 = vxor.u32 %v1177, 2147483648
    %v1180 = vxor.u32 %v1178, 2147483648
    %v1181 = vmul.f32 %v1179, 1.442695
    %v1182 = vpow.pop %v1181
    %v1183 = vmul.f32 %v1180, 1.442695
    %v1184 = vpow.pop %v1183
    %v1185 = vadd.f32 %v1182, 1.0
    %v1186 = vadd.f32 %v1184, 1.0
    %v1187 = vrcp.pop %v1185
    %v1188 = vmul.f32 %v1185, %v1187
    %v1189 = vsub.f32 1.0, %v1188
    %v1190 = vmul.f32 %v1187, %v1189
    %v1191 = vadd.f32 %v1187, %v1190
    %vm1192 = vweird.f32 %v1185
    %vm1193 = vweird.f32 %v1187
    %vm1194 = vmor %vm1192, %vm1193
    %v1195 = vsel %vm1194, %v1187, %v1191
    %v1196 = vand.u32 2147483647, %v1185
    %vm1197 = vcmp.eq.f32.partialorder %v1196, 8.507059e+37
    %v1198 = vand.u32 %v1185, 2147483648
    %v1199 = vor.u32 1.1754944e-38, %v1198
    %v1200 = vsel %vm1197, %v1199, %v1195
    %v1201 = vmul.f32 1.0, %v1200
    %v1202 = vrcp.pop %v1186
    %v1203 = vmul.f32 %v1186, %v1202
    %v1204 = vsub.f32 1.0, %v1203
    %v1205 = vmul.f32 %v1202, %v1204
    %v1206 = vadd.f32 %v1202, %v1205
    %vm1207 = vweird.f32 %v1186
    %vm1208 = vweird.f32 %v1202
    %vm1209 = vmor %vm1207, %vm1208
    %v1210 = vsel %vm1209, %v1202, %v1206
    %v1211 = vand.u32 2147483647, %v1186
    %vm1212 = vcmp.eq.f32.partialorder %v1211, 8.507059e+37
    %v1213 = vand.u32 %v1186, 2147483648
    %v1214 = vor.u32 1.1754944e-38, %v1213
    %v1215 = vsel %vm1212, %v1214, %v1210
    %v1216 = vmul.f32 1.0, %v1215
    %v1217 = vtanh.pop %v1177
    %v1218 = vtanh.pop %v1178
    %1221 = vrot.lane.b32.xlu0 %v1155, 32
    %v1222 = vpop.permute.xlu0 %1221
    %1223 = vrot.lane.b32.xlu0 %v1156, 32
    %v1224 = vpop.permute.xlu0 %1223
    %v1227 = vmul.f32 %v1201, %v1222
    %v1228 = vmul.f32 %v1216, %v1224
    %1231 = vrot.lane.b32.xlu0 %v1217, 64
    %v1232 = vpop.permute.xlu0 %1231
    %1233 = vrot.lane.b32.xlu0 %v1218, 64
    %v1234 = vpop.permute.xlu0 %1233
    %v1237 = vmul.f32 %v1201, %v1232
    %v1238 = vmul.f32 %v1216, %v1234
    %1241 = vrot.lane.b32.xlu0 %v1237, 32
    %v1242 = vpop.permute.xlu0 %1241
    %1243 = vrot.lane.b32.xlu0 %v1238, 32
    %v1244 = vpop.permute.xlu0 %1243
    %v1247 = vadd.f32 %v1227, %v1242
    %v1248 = vadd.f32 %v1228, %v1244
    %v1249 = vtanh.pop %v1247
    %v1250 = vtanh.pop %v1248
    %1253 = vrot.lane.b32.xlu0 %v1249, 64
    %v1254 = vpop.permute.xlu0 %1253
    %1255 = vrot.lane.b32.xlu0 %v1250, 64
    %v1256 = vpop.permute.xlu0 %1255
    %v1259 = vmul.f32 %v1201, %v1254
    %v1260 = vmul.f32 %v1216, %v1256
    %v1261 = vmul.u32 %v643, 4
    %v1262 = vadd.s32 %v642, %v1261
    %vm1263 = vcmp.lt.s32.totalorder %v1262, %v635
    %vm1264 = vcmp.lt.s32.totalorder %v1262, %v638
    %1267 = vrot.lane.b32.xlu0 %v1259, 32
    %v1268 = vpop.permute.xlu0 %1267
    %1269 = vrot.lane.b32.xlu0 %v1260, 32
    %v1270 = vpop.permute.xlu0 %1269
    %v1273 = vsel %vm1263, %v1268, %v1145
    %v1274 = vsel %vm1264, %v1270, %v1146
    %1277 = vrot.lane.b32.xlu0 %v1247, 96
    %v1278 = vpop.permute.xlu0 %1277
    %1279 = vrot.lane.b32.xlu0 %v1248, 96
    %v1280 = vpop.permute.xlu0 %1279
    %v1283 = vsel %vm1263, %v1278, %v1155
    %v1284 = vsel %vm1264, %v1280, %v1156
    %v1285 = vld [vmem:[#allocation2 + $0x28] sm:$0xff]
    %v1286 = vld [vmem:[#allocation2 + $0x68] sm:$0xff]
    %v1287 = vpack.c.bf16 %v1274, %v1273
    %v1289 = vsel %vm658, %v1287, 0
    %1291 = vmatpush.bf16.msra.mxu0 0
    %1292 = vmatpush.bf16.msra.mxu0 0
    %1293 = vmatpush.bf16.msra.mxu0 0
    %1294 = vmatpush.bf16.msra.mxu0 0
    %1295 = vmatpush.bf16.msra.mxu0 0
    %1296 = vmatpush.bf16.msra.mxu0 0
    %1297 = vmatpush.bf16.msra.mxu0 %v655
    %1298 = vmatpush.bf16.msra.mxu0 %v654
    %1299 = vmatmul.bf16.gmra.mxu0 %v1289
    %v1300 = vpop.f32.mrf.mxu0
    %v1301 = vadd.f32 0.0, %v1300
    %v1302 = vpop.f32.mrf.mxu0
    %v1303 = vadd.f32 0.0, %v1302
    %1304 = vdwg.mxu0
    %v1305 = vadd.f32 %v1285, %v1301
    %v1306 = vadd.f32 %v1286, %v1303
    %v1307 = vxor.u32 %v1305, 2147483648
    %v1308 = vxor.u32 %v1306, 2147483648
    %v1309 = vmul.f32 %v1307, 1.442695
    %v1310 = vpow.pop %v1309
    %v1311 = vmul.f32 %v1308, 1.442695
    %v1312 = vpow.pop %v1311
    %v1313 = vadd.f32 %v1310, 1.0
    %v1314 = vadd.f32 %v1312, 1.0
    %v1315 = vrcp.pop %v1313
    %v1316 = vmul.f32 %v1313, %v1315
    %v1317 = vsub.f32 1.0, %v1316
    %v1318 = vmul.f32 %v1315, %v1317
    %v1319 = vadd.f32 %v1315, %v1318
    %vm1320 = vweird.f32 %v1313
    %vm1321 = vweird.f32 %v1315
    %vm1322 = vmor %vm1320, %vm1321
    %v1323 = vsel %vm1322, %v1315, %v1319
    %v1324 = vand.u32 2147483647, %v1313
    %vm1325 = vcmp.eq.f32.partialorder %v1324, 8.507059e+37
    %v1326 = vand.u32 %v1313, 2147483648
    %v1327 = vor.u32 1.1754944e-38, %v1326
    %v1328 = vsel %vm1325, %v1327, %v1323
    %v1329 = vmul.f32 1.0, %v1328
    %v1330 = vrcp.pop %v1314
    %v1331 = vmul.f32 %v1314, %v1330
    %v1332 = vsub.f32 1.0, %v1331
    %v1333 = vmul.f32 %v1330, %v1332
    %v1334 = vadd.f32 %v1330, %v1333
    %vm1335 = vweird.f32 %v1314
    %vm1336 = vweird.f32 %v1330
    %vm1337 = vmor %vm1335, %vm1336
    %v1338 = vsel %vm1337, %v1330, %v1334
    %v1339 = vand.u32 2147483647, %v1314
    %vm1340 = vcmp.eq.f32.partialorder %v1339, 8.507059e+37
    %v1341 = vand.u32 %v1314, 2147483648
    %v1342 = vor.u32 1.1754944e-38, %v1341
    %v1343 = vsel %vm1340, %v1342, %v1338
    %v1344 = vmul.f32 1.0, %v1343
    %v1345 = vtanh.pop %v1305
    %v1346 = vtanh.pop %v1306
    %1349 = vrot.lane.b32.xlu0 %v1283, 32
    %v1350 = vpop.permute.xlu0 %1349
    %1351 = vrot.lane.b32.xlu0 %v1284, 32
    %v1352 = vpop.permute.xlu0 %1351
    %v1355 = vmul.f32 %v1329, %v1350
    %v1356 = vmul.f32 %v1344, %v1352
    %1359 = vrot.lane.b32.xlu0 %v1345, 64
    %v1360 = vpop.permute.xlu0 %1359
    %1361 = vrot.lane.b32.xlu0 %v1346, 64
    %v1362 = vpop.permute.xlu0 %1361
    %v1365 = vmul.f32 %v1329, %v1360
    %v1366 = vmul.f32 %v1344, %v1362
    %1369 = vrot.lane.b32.xlu0 %v1365, 32
    %v1370 = vpop.permute.xlu0 %1369
    %1371 = vrot.lane.b32.xlu0 %v1366, 32
    %v1372 = vpop.permute.xlu0 %1371
    %v1375 = vadd.f32 %v1355, %v1370
    %v1376 = vadd.f32 %v1356, %v1372
    %v1377 = vtanh.pop %v1375
    %v1378 = vtanh.pop %v1376
    %1381 = vrot.lane.b32.xlu0 %v1377, 64
    %v1382 = vpop.permute.xlu0 %1381
    %1383 = vrot.lane.b32.xlu0 %v1378, 64
    %v1384 = vpop.permute.xlu0 %1383
    %v1387 = vmul.f32 %v1329, %v1382
    %v1388 = vmul.f32 %v1344, %v1384
    %v1389 = vmul.u32 %v643, 5
    %v1390 = vadd.s32 %v642, %v1389
    %vm1391 = vcmp.lt.s32.totalorder %v1390, %v635
    %vm1392 = vcmp.lt.s32.totalorder %v1390, %v638
    %1395 = vrot.lane.b32.xlu0 %v1387, 32
    %v1396 = vpop.permute.xlu0 %1395
    %1397 = vrot.lane.b32.xlu0 %v1388, 32
    %v1398 = vpop.permute.xlu0 %1397
    %v1401 = vsel %vm1391, %v1396, %v1273
    %v1402 = vsel %vm1392, %v1398, %v1274
    %1405 = vrot.lane.b32.xlu0 %v1375, 96
    %v1406 = vpop.permute.xlu0 %1405
    %1407 = vrot.lane.b32.xlu0 %v1376, 96
    %v1408 = vpop.permute.xlu0 %1407
    %v1411 = vsel %vm1391, %v1406, %v1283
    %v1412 = vsel %vm1392, %v1408, %v1284
    %v1413 = vld [vmem:[#allocation2 + $0x30] sm:$0xff]
    %v1414 = vld [vmem:[#allocation2 + $0x70] sm:$0xff]
    %v1415 = vpack.c.bf16 %v1402, %v1401
    %v1417 = vsel %vm658, %v1415, 0
    %1419 = vmatpush.bf16.msra.mxu0 0
    %1420 = vmatpush.bf16.msra.mxu0 0
    %1421 = vmatpush.bf16.msra.mxu0 0
    %1422 = vmatpush.bf16.msra.mxu0 0
    %1423 = vmatpush.bf16.msra.mxu0 0
    %1424 = vmatpush.bf16.msra.mxu0 0
    %1425 = vmatpush.bf16.msra.mxu0 %v655
    %1426 = vmatpush.bf16.msra.mxu0 %v654
    %1427 = vmatmul.bf16.gmra.mxu0 %v1417
    %v1428 = vpop.f32.mrf.mxu0
    %v1429 = vadd.f32 0.0, %v1428
    %v1430 = vpop.f32.mrf.mxu0
    %v1431 = vadd.f32 0.0, %v1430
    %1432 = vdwg.mxu0
    %v1433 = vadd.f32 %v1413, %v1429
    %v1434 = vadd.f32 %v1414, %v1431
    %v1435 = vxor.u32 %v1433, 2147483648
    %v1436 = vxor.u32 %v1434, 2147483648
    %v1437 = vmul.f32 %v1435, 1.442695
    %v1438 = vpow.pop %v1437
    %v1439 = vmul.f32 %v1436, 1.442695
    %v1440 = vpow.pop %v1439
    %v1441 = vadd.f32 %v1438, 1.0
    %v1442 = vadd.f32 %v1440, 1.0
    %v1443 = vrcp.pop %v1441
    %v1444 = vmul.f32 %v1441, %v1443
    %v1445 = vsub.f32 1.0, %v1444
    %v1446 = vmul.f32 %v1443, %v1445
    %v1447 = vadd.f32 %v1443, %v1446
    %vm1448 = vweird.f32 %v1441
    %vm1449 = vweird.f32 %v1443
    %vm1450 = vmor %vm1448, %vm1449
    %v1451 = vsel %vm1450, %v1443, %v1447
    %v1452 = vand.u32 2147483647, %v1441
    %vm1453 = vcmp.eq.f32.partialorder %v1452, 8.507059e+37
    %v1454 = vand.u32 %v1441, 2147483648
    %v1455 = vor.u32 1.1754944e-38, %v1454
    %v1456 = vsel %vm1453, %v1455, %v1451
    %v1457 = vmul.f32 1.0, %v1456
    %v1458 = vrcp.pop %v1442
    %v1459 = vmul.f32 %v1442, %v1458
    %v1460 = vsub.f32 1.0, %v1459
    %v1461 = vmul.f32 %v1458, %v1460
    %v1462 = vadd.f32 %v1458, %v1461
    %vm1463 = vweird.f32 %v1442
    %vm1464 = vweird.f32 %v1458
    %vm1465 = vmor %vm1463, %vm1464
    %v1466 = vsel %vm1465, %v1458, %v1462
    %v1467 = vand.u32 2147483647, %v1442
    %vm1468 = vcmp.eq.f32.partialorder %v1467, 8.507059e+37
    %v1469 = vand.u32 %v1442, 2147483648
    %v1470 = vor.u32 1.1754944e-38, %v1469
    %v1471 = vsel %vm1468, %v1470, %v1466
    %v1472 = vmul.f32 1.0, %v1471
    %v1473 = vtanh.pop %v1433
    %v1474 = vtanh.pop %v1434
    %1477 = vrot.lane.b32.xlu0 %v1411, 32
    %v1478 = vpop.permute.xlu0 %1477
    %1479 = vrot.lane.b32.xlu0 %v1412, 32
    %v1480 = vpop.permute.xlu0 %1479
    %v1483 = vmul.f32 %v1457, %v1478
    %v1484 = vmul.f32 %v1472, %v1480
    %1487 = vrot.lane.b32.xlu0 %v1473, 64
    %v1488 = vpop.permute.xlu0 %1487
    %1489 = vrot.lane.b32.xlu0 %v1474, 64
    %v1490 = vpop.permute.xlu0 %1489
    %v1493 = vmul.f32 %v1457, %v1488
    %v1494 = vmul.f32 %v1472, %v1490
    %1497 = vrot.lane.b32.xlu0 %v1493, 32
    %v1498 = vpop.permute.xlu0 %1497
    %1499 = vrot.lane.b32.xlu0 %v1494, 32
    %v1500 = vpop.permute.xlu0 %1499
    %v1503 = vadd.f32 %v1483, %v1498
    %v1504 = vadd.f32 %v1484, %v1500
    %v1505 = vtanh.pop %v1503
    %v1506 = vtanh.pop %v1504
    %1509 = vrot.lane.b32.xlu0 %v1505, 64
    %v1510 = vpop.permute.xlu0 %1509
    %1511 = vrot.lane.b32.xlu0 %v1506, 64
    %v1512 = vpop.permute.xlu0 %1511
    %v1515 = vmul.f32 %v1457, %v1510
    %v1516 = vmul.f32 %v1472, %v1512
    %v1517 = vmul.u32 %v643, 6
    %v1518 = vadd.s32 %v642, %v1517
    %vm1519 = vcmp.lt.s32.totalorder %v1518, %v635
    %vm1520 = vcmp.lt.s32.totalorder %v1518, %v638
    %1523 = vrot.lane.b32.xlu0 %v1515, 32
    %v1524 = vpop.permute.xlu0 %1523
    %1525 = vrot.lane.b32.xlu0 %v1516, 32
    %v1526 = vpop.permute.xlu0 %1525
    %v1529 = vsel %vm1519, %v1524, %v1401
    %v1530 = vsel %vm1520, %v1526, %v1402
    %1533 = vrot.lane.b32.xlu0 %v1503, 96
    %v1534 = vpop.permute.xlu0 %1533
    %1535 = vrot.lane.b32.xlu0 %v1504, 96
    %v1536 = vpop.permute.xlu0 %1535
    %v1539 = vsel %vm1519, %v1534, %v1411
    %v1540 = vsel %vm1520, %v1536, %v1412
    %v1541 = vld [vmem:[#allocation2 + $0x38] sm:$0xff]
    %v1542 = vld [vmem:[#allocation2 + $0x78] sm:$0xff]
    %v1543 = vpack.c.bf16 %v1530, %v1529
    %v1545 = vsel %vm658, %v1543, 0
    %1547 = vmatpush.bf16.msra.mxu0 0
    %1548 = vmatpush.bf16.msra.mxu0 0
    %1549 = vmatpush.bf16.msra.mxu0 0
    %1550 = vmatpush.bf16.msra.mxu0 0
    %1551 = vmatpush.bf16.msra.mxu0 0
    %1552 = vmatpush.bf16.msra.mxu0 0
    %1553 = vmatpush.bf16.msra.mxu0 %v655
    %1554 = vmatpush.bf16.msra.mxu0 %v654
    %1555 = vmatmul.bf16.gmra.mxu0 %v1545
    %v1556 = vpop.f32.mrf.mxu0
    %v1557 = vadd.f32 0.0, %v1556
    %v1558 = vpop.f32.mrf.mxu0
    %v1559 = vadd.f32 0.0, %v1558
    %1560 = vdwg.mxu0
    %v1561 = vadd.f32 %v1541, %v1557
    %v1562 = vadd.f32 %v1542, %v1559
    %v1563 = vxor.u32 %v1561, 2147483648
    %v1564 = vxor.u32 %v1562, 2147483648
    %v1565 = vmul.f32 %v1563, 1.442695
    %v1566 = vpow.pop %v1565
    %v1567 = vmul.f32 %v1564, 1.442695
    %v1568 = vpow.pop %v1567
    %v1569 = vadd.f32 %v1566, 1.0
    %v1570 = vadd.f32 %v1568, 1.0
    %v1571 = vrcp.pop %v1569
    %v1572 = vmul.f32 %v1569, %v1571
    %v1573 = vsub.f32 1.0, %v1572
    %v1574 = vmul.f32 %v1571, %v1573
    %v1575 = vadd.f32 %v1571, %v1574
    %vm1576 = vweird.f32 %v1569
    %vm1577 = vweird.f32 %v1571
    %vm1578 = vmor %vm1576, %vm1577
    %v1579 = vsel %vm1578, %v1571, %v1575
    %v1580 = vand.u32 2147483647, %v1569
    %vm1581 = vcmp.eq.f32.partialorder %v1580, 8.507059e+37
    %v1582 = vand.u32 %v1569, 2147483648
    %v1583 = vor.u32 1.1754944e-38, %v1582
    %v1584 = vsel %vm1581, %v1583, %v1579
    %v1585 = vmul.f32 1.0, %v1584
    %v1586 = vrcp.pop %v1570
    %v1587 = vmul.f32 %v1570, %v1586
    %v1588 = vsub.f32 1.0, %v1587
    %v1589 = vmul.f32 %v1586, %v1588
    %v1590 = vadd.f32 %v1586, %v1589
    %vm1591 = vweird.f32 %v1570
    %vm1592 = vweird.f32 %v1586
    %vm1593 = vmor %vm1591, %vm1592
    %v1594 = vsel %vm1593, %v1586, %v1590
    %v1595 = vand.u32 2147483647, %v1570
    %vm1596 = vcmp.eq.f32.partialorder %v1595, 8.507059e+37
    %v1597 = vand.u32 %v1570, 2147483648
    %v1598 = vor.u32 1.1754944e-38, %v1597
    %v1599 = vsel %vm1596, %v1598, %v1594
    %v1600 = vmul.f32 1.0, %v1599
    %v1601 = vtanh.pop %v1561
    %v1602 = vtanh.pop %v1562
    %1605 = vrot.lane.b32.xlu0 %v1539, 32
    %v1606 = vpop.permute.xlu0 %1605
    %1607 = vrot.lane.b32.xlu0 %v1540, 32
    %v1608 = vpop.permute.xlu0 %1607
    %v1611 = vmul.f32 %v1585, %v1606
    %v1612 = vmul.f32 %v1600, %v1608
    %1615 = vrot.lane.b32.xlu0 %v1601, 64
    %v1616 = vpop.permute.xlu0 %1615
    %1617 = vrot.lane.b32.xlu0 %v1602, 64
    %v1618 = vpop.permute.xlu0 %1617
    %v1621 = vmul.f32 %v1585, %v1616
    %v1622 = vmul.f32 %v1600, %v1618
    %1625 = vrot.lane.b32.xlu0 %v1621, 32
    %v1626 = vpop.permute.xlu0 %1625
    %1627 = vrot.lane.b32.xlu0 %v1622, 32
    %v1628 = vpop.permute.xlu0 %1627
    %v1631 = vadd.f32 %v1611, %v1626
    %v1632 = vadd.f32 %v1612, %v1628
    %v1633 = vtanh.pop %v1631
    %v1634 = vtanh.pop %v1632
    %1637 = vrot.lane.b32.xlu0 %v1633, 64
    %v1638 = vpop.permute.xlu0 %1637
    %1639 = vrot.lane.b32.xlu0 %v1634, 64
    %v1640 = vpop.permute.xlu0 %1639
    %v1643 = vmul.f32 %v1585, %v1638
    %v1644 = vmul.f32 %v1600, %v1640
    %v1645 = vmul.u32 %v643, 7
    %v1646 = vadd.s32 %v642, %v1645
    %vm1647 = vcmp.lt.s32.totalorder %v1646, %v635
    %vm1648 = vcmp.lt.s32.totalorder %v1646, %v638
    %1651 = vrot.lane.b32.xlu0 %v1643, 32
    %v1652 = vpop.permute.xlu0 %1651
    %1653 = vrot.lane.b32.xlu0 %v1644, 32
    %v1654 = vpop.permute.xlu0 %1653
    %v1657 = vsel %vm1647, %v1652, %v1529
    %v1658 = vsel %vm1648, %v1654, %v1530
    %v1659 = vpack.c.bf16 %v1658, %v1657
    %v1660 = vld [vmem:[#allocation9] sm:$0xf]
    %v1661 = vld [vmem:[#allocation9 + $0x4] sm:$0xf]
    %v1662 = vld [vmem:[#allocation9 + $0x8] sm:$0xf]
    %v1663 = vld [vmem:[#allocation9 + $0xc] sm:$0xf]
    %v1664 = vld [vmem:[%s6] sm:$0x1]
    %v1666 = vperm.slane %v1664, 0
    %v1672 = vunpack.c.l.b16 %v1660
    %v1673 = vunpack.c.l.b16 %v1661
    %v1674 = vunpack.c.l.b16 %v1662
    %v1675 = vunpack.c.l.b16 %v1663
    %v1676 = vpack.c.b16 %v1673, %v1672
    %v1677 = vpack.c.b16 %v1675, %v1674
    %v1681 = vsel %vm658, %v1659, 0
    %1683 = vmatpush.bf16.msra.mxu0 0
    %1684 = vmatpush.bf16.msra.mxu0 0
    %1685 = vmatpush.bf16.msra.mxu0 0
    %1686 = vmatpush.bf16.msra.mxu0 0
    %1687 = vmatpush.bf16.msra.mxu0 0
    %1688 = vmatpush.bf16.msra.mxu0 0
    %1689 = vmatpush.bf16.msra.mxu0 %v1677
    %1690 = vmatpush.bf16.msra.mxu0 %v1676
    %1691 = vmatmul.bf16.gmra.mxu0 %v1681
    %v1692 = vpop.f32.mrf.mxu0
    %v1693 = vadd.f32 %v1666, %v1692
    %v1694 = vpop.f32.mrf.mxu0
    %v1695 = vadd.f32 %v1666, %v1694
    %1696 = vdwg.mxu0
    %v1697 = vtanh.pop %v1693
    %v1698 = vtanh.pop %v1695
    %1699 = vst [vmem:[#allocation11] sm:$0xff] %v1697
    %1700 = vst [vmem:[#allocation11 + $0x8] sm:$0xff] %v1698
    // Predicated region
    $region46: #{tpu_custom_call.1} parent=1 // pred_check
      _
    $region47: #{tpu_custom_call.1} parent=1 // pred_check_branch
      %1702 = sbr.rel (0) target = $region49
    $region48: #{tpu_custom_call.1} parent=1 // pred_region
      %1704 = vsyncadd [#allocation5], 0
      %s1705 = sshll.u32 [#allocation11], 4
      %s1706 = int_to_ptr.vmem [resolvable:$true] %s1705
      %s1707 = sshll.u32 %s7, 4
      %s1708 = int_to_ptr.hbm [resolvable:$true] %s1707
      %1713 = dma.vmem_to_hbm [thread:$0]  %s1706, 256, %s1708, [#allocation5], 128, 128, 8
    $region49: #{tpu_custom_call.1} parent=1 // pred_fallthru
      _
    // Predicated region
    $region50: #{tpu_custom_call.1} parent=1 // pred_check
      _
    $region51: #{tpu_custom_call.1} parent=1 // pred_check_branch
      %1715 = sbr.rel (0) target = $region53
    $region52: #{tpu_custom_call.1} parent=1 // pred_region
      %1717 = dma.done [#allocation5], 256
    $region53: #{tpu_custom_call.1} parent=1 // pred_fallthru
      _
    %1718 = vsyncpa [#allocation4], 1
    %1719 = vsyncpa [#allocation7], 1
    %1720 = vsyncpa [#allocation10], 1
    %1721 = vsyncpa [#allocation5], 1

</llo_original>
